<compile_context>
chip_gen: v5e
topology: v5e:2x2
jax: 0.10.0
libtpu: 0.0.40
codegen_flags: <defaults>
</compile_context>

<pallas_src>
import functools

import jax
import jax.numpy as jnp
import numpy as np
from jax.experimental import pallas as pl
from jax.experimental.pallas import tpu as pltpu

_LANE = 128


def _round_up(x, m):
    return (x + m - 1) // m * m


# ----------------------------- Pallas kernel --------------------------------
def _mapper_kernel(
    x_a_ref, emb_ref,
    sw1_ref, sw2_ref,            # shape_encoder weights (BN scale folded in sw1)
    ew1t_ref, ew1s_ref,          # editor L1, split: text-embed rows / shape_fts rows
    ew2_ref, ew3_ref, ew4_ref,   # editor L2..L4 weights (BN folded into L2/L3)
    shift_ref,                   # stacked per-layer shifts, (8, Wmax) f32
    out_ref,
    *, dp, bop, epi_dtype,
):
    f32 = jnp.float32
    bf16 = jnp.bfloat16

    def relu_epi(acc, shift):
        # BN scale already folded into the weight; bias + BN shift folded into
        # `shift`, so the epilogue is a single add + relu (in epi_dtype).
        return jnp.maximum((acc + shift).astype(epi_dtype), 0)

    emb = emb_ref[...]          # bf16 (tile, Tp)
    x_a = x_a_ref[...]          # bf16 (tile, Dp)

    # Editor layer 1, text-embedding half: issued first so this MXU work
    # overlaps the shape_encoder chain (no in-kernel concat materialized).
    acc1 = jnp.dot(emb, ew1t_ref[...], preferred_element_type=f32)

    # ---- shape_encoder: Linear -> BN -> ReLU -> (Dropout=id) -> Linear ----
    h = jnp.dot(x_a, sw1_ref[...], preferred_element_type=f32)
    h = relu_epi(h, shift_ref[0:1, :dp])
    shape_fts = (jnp.dot(h.astype(bf16), sw2_ref[...], preferred_element_type=f32)
                 + shift_ref[1:2, :dp])

    # ---- editor ----
    # layer 1: accumulate the shape_fts half, then folded-BN + ReLU
    acc1 = acc1 + jnp.dot(shape_fts.astype(bf16), ew1s_ref[...],
                          preferred_element_type=f32)
    h = relu_epi(acc1, shift_ref[2:3, :bop])
    # layer 2
    h = relu_epi(jnp.dot(h.astype(bf16), ew2_ref[...], preferred_element_type=f32),
                 shift_ref[3:4, :dp])
    # layer 3
    h = relu_epi(jnp.dot(h.astype(bf16), ew3_ref[...], preferred_element_type=f32),
                 shift_ref[4:5, :dp])
    # layer 4 (final): Linear with bias, no BN / ReLU (remove_final_bias=False)
    edit_vec = (jnp.dot(h.astype(bf16), ew4_ref[...], preferred_element_type=f32)
                + shift_ref[5:6, :dp])
    out_ref[...] = edit_vec.astype(out_ref.dtype)


# ------------------------------ parameter init ------------------------------
def _linear_init(key, in_dim, out_dim):
    """PyTorch nn.Linear default init: U(-1/sqrt(in), 1/sqrt(in)).
    Weight returned already transposed to (in, out); bias as (1, out)."""
    kw, kb = jax.random.split(key)
    bound = 1.0 / np.sqrt(in_dim)
    w = jax.random.uniform(kw, (in_dim, out_dim), jnp.float32, -bound, bound)
    b = jax.random.uniform(kb, (1, out_dim), jnp.float32, -bound, bound)
    return w, b


def _bn_init(key, dim, eps=1e-5):
    """Deterministic (non-trivial) BatchNorm1d eval-mode params folded to
    scale/shift:  bn(x) = (x - mean)/sqrt(var+eps)*gamma + beta."""
    kg, kb, km, kv = jax.random.split(key, 4)
    gamma = jax.random.uniform(kg, (1, dim), jnp.float32, 0.9, 1.1)
    beta = jax.random.uniform(kb, (1, dim), jnp.float32, -0.1, 0.1)
    mean = jax.random.uniform(km, (1, dim), jnp.float32, -0.1, 0.1)
    var = jax.random.uniform(kv, (1, dim), jnp.float32, 0.8, 1.2)
    scale = gamma / jnp.sqrt(var + eps)
    shift = beta - mean * scale
    return scale, shift


def init_params(key, shape_latent_dim, text_embed_dim, bottleneck_dim):
    D, T, Bo = shape_latent_dim, text_embed_dim, bottleneck_dim
    ks = jax.random.split(key, 10)
    p = {}
    # shape_encoder: MLP(D -> [D, D]) with b_norm=True
    p["sw1"], p["sb1"] = _linear_init(ks[0], D, D)
    p["ss1"], p["st1"] = _bn_init(ks[1], D)
    p["sw2"], p["sb2"] = _linear_init(ks[2], D, D)
    # editor: MLP(D+T -> [Bo, D, D, D]), b_norm=True, final layer keeps bias
    p["ew1"], p["eb1"] = _linear_init(ks[3], D + T, Bo)
    p["es1"], p["et1"] = _bn_init(ks[4], Bo)
    p["ew2"], p["eb2"] = _linear_init(ks[5], Bo, D)
    p["es2"], p["et2"] = _bn_init(ks[6], D)
    p["ew3"], p["eb3"] = _linear_init(ks[7], D, D)
    p["es3"], p["et3"] = _bn_init(ks[8], D)
    p["ew4"], p["eb4"] = _linear_init(ks[9], D, D)
    return p


# ------------------------------ pallas wrapper -------------------------------
def _pad2(a, rows, cols, dtype):
    """Zero-pad a 2-D array to (rows, cols) and cast."""
    out = jnp.zeros((rows, cols), dtype)
    return out.at[: a.shape[0], : a.shape[1]].set(a.astype(dtype))


@functools.partial(jax.jit, static_argnames=("batch_tile", "bf16_epilogue"))
def _mapper_impl(x_a, embed_ab, params, batch_tile, bf16_epilogue):
    f32, bf16 = jnp.float32, jnp.bfloat16
    B, D = x_a.shape
    T = embed_ab.shape[1]
    Bo = params["eb1"].shape[1]

    Dp = _round_up(D, _LANE)
    Tp = _round_up(T, _LANE)
    Bop = _round_up(Bo, _LANE)
    Wmax = max(Dp, Bop)
    Bp = _round_up(B, batch_tile)            # pad batch -> no divisibility assert
    grid = (Bp // batch_tile,)

    # ---- activations: zero-pad batch + feature dims, bf16 MXU operands
    x_p = _pad2(x_a, Bp, Dp, bf16)
    e_p = _pad2(embed_ab, Bp, Tp, bf16)

    # ---- fold eval-mode BatchNorm into weights (column scale) and shifts:
    #        bn(x@W + b) = x @ (W * s) + (b * s + t)
    sw1f = params["sw1"] * params["ss1"]
    ew1f = params["ew1"] * params["es1"]
    ew2f = params["ew2"] * params["es2"]
    ew3f = params["ew3"] * params["es3"]

    shifts = jnp.concatenate([
        _pad2(params["sb1"] * params["ss1"] + params["st1"], 1, Wmax, f32),
        _pad2(params["sb2"], 1, Wmax, f32),
        _pad2(params["eb1"] * params["es1"] + params["et1"], 1, Wmax, f32),
        _pad2(params["eb2"] * params["es2"] + params["et2"], 1, Wmax, f32),
        _pad2(params["eb3"] * params["es3"] + params["et3"], 1, Wmax, f32),
        _pad2(params["eb4"], 1, Wmax, f32),
    ], axis=0)
    shifts = jnp.zeros((8, Wmax), f32).at[:6].set(shifts)    # pad rows to 8

    plist = [
        _pad2(sw1f, Dp, Dp, bf16),
        _pad2(params["sw2"], Dp, Dp, bf16),
        _pad2(ew1f[D:], Tp, Bop, bf16),      # editor L1: text-embedding rows
        _pad2(ew1f[:D], Dp, Bop, bf16),      # editor L1: shape_fts rows
        _pad2(ew2f, Bop, Dp, bf16),
        _pad2(ew3f, Dp, Dp, bf16),
        _pad2(params["ew4"], Dp, Dp, bf16),
        shifts,                              # single coalesced shift DMA
    ]

    def const_spec(arr):
        # whole parameter resident in VMEM; constant block index -> DMA'd once
        return pl.BlockSpec(arr.shape, lambda i: (0, 0))

    in_specs = (
        [pl.BlockSpec((batch_tile, Dp), lambda i: (i, 0)),
         pl.BlockSpec((batch_tile, Tp), lambda i: (i, 0))]
        + [const_spec(a) for a in plist]
    )
    out_spec = pl.BlockSpec((batch_tile, Dp), lambda i: (i, 0))

    # ---- tight VMEM budget: double-buffered params/tiles + small headroom
    param_bytes = sum(int(a.size) * a.dtype.itemsize for a in plist)
    act_bytes = batch_tile * ((Dp + Tp) * 2 + Dp * 4)        # bf16 in, f32 out
    vmem_limit = int(2 * (param_bytes + act_bytes) + (8 << 20))

    # ---- advisory cost estimate for the XLA scheduler
    flops = int(2 * Bp * (4 * Dp * Dp + (Dp + Tp) * Bop + Bop * Dp))
    bytes_accessed = int(x_p.size * 2 + e_p.size * 2 + param_bytes + Bp * Dp * 4)

    kernel = functools.partial(
        _mapper_kernel, dp=Dp, bop=Bop,
        epi_dtype=bf16 if bf16_epilogue else f32)

    out_padded = pl.pallas_call(
        kernel,
        out_shape=jax.ShapeDtypeStruct((Bp, Dp), jnp.float32),
        grid_spec=pltpu.PrefetchScalarGridSpec(
            num_scalar_prefetch=0,
            grid=grid,
            in_specs=in_specs,
            out_specs=out_spec,
        ),
        compiler_params=pltpu.CompilerParams(
            dimension_semantics=("parallel",),
            vmem_limit_bytes=vmem_limit,
        ),
        cost_estimate=pl.CostEstimate(
            flops=flops, transcendentals=0, bytes_accessed=bytes_accessed),
    )(x_p, e_p, *plist)

    # padded lanes/rows are exactly zero / unused; slice back to logical shape
    return out_padded[:B, :D]


def mlp_latent_mapper(x_a, embed_ab, params, batch_tile=None):
    """Eval-mode forward of MLPLatentMapperBottleneckedCoupled (Pallas TPU)."""
    kind = jax.devices()[0].device_kind.lower()
    is_v7 = ("v7" in kind) or ("7x" in kind)
    has_bf16_vpu = is_v7 or ("v6" in kind)        # v5e/older: no bf16 VALU path
    if batch_tile is None:
        num_cores = 2 if is_v7 else 1             # v7x has 2 TensorCores/chip
        bp0 = _round_up(max(x_a.shape[0], 16), 16)
        per_core = -(-bp0 // num_cores)
        batch_tile = min(512, _round_up(per_core, 16))
    return _mapper_impl(x_a, embed_ab, params,
                        batch_tile=int(batch_tile),
                        bf16_epilogue=bool(has_bf16_vpu))


# ------------------------------ pure-JAX reference ---------------------------
def reference_forward(x_a, embed_ab, p):
    relu = lambda v: jnp.maximum(v, 0.0)
    # shape_encoder
    h = x_a @ p["sw1"] + p["sb1"]
    h = relu(h * p["ss1"] + p["st1"])
    shape_fts = h @ p["sw2"] + p["sb2"]
    # editor (explicit concat, matching the PyTorch module)
    x = jnp.concatenate([shape_fts, embed_ab], axis=1)
    h = relu((x @ p["ew1"] + p["eb1"]) * p["es1"] + p["et1"])
    h = relu((h @ p["ew2"] + p["eb2"]) * p["es2"] + p["et2"])
    h = relu((h @ p["ew3"] + p["eb3"]) * p["es3"] + p["et3"])
    return h @ p["ew4"] + p["eb4"]


# ----------------------------------- main ------------------------------------
if __name__ == "__main__":
    batch = 256
    shape_latent_dim = 32
    text_embed_dim = 64
    bottleneck_dim = 128

    key = jax.random.PRNGKey(0)
    k_x, k_e, k_p = jax.random.split(key, 3)
    x_a = jax.random.normal(k_x, (batch, shape_latent_dim), jnp.float32)
    embed_ab = jax.random.normal(k_e, (batch, text_embed_dim), jnp.float32)
    params = init_params(k_p, shape_latent_dim, text_embed_dim, bottleneck_dim)

    out = mlp_latent_mapper(x_a, embed_ab, params)   # batch_tile auto per chip
    out = jax.block_until_ready(out)

    ref = reference_forward(x_a, embed_ab, params)
    # bf16 matmul operands / folded-BN bf16 weights with f32 accumulation
    np.testing.assert_allclose(np.asarray(out), np.asarray(ref),
                               rtol=5e-2, atol=5e-2)
    print("KERNEL_OK")
</pallas_src>

<mosaic_0001>
module attributes {stable_mosaic.version = 11 : i64} {
  func.func @_mapper_kernel(%arg0: i32, %arg1: memref<256x128xbf16, #tpu.memory_space<vmem>>, %arg2: memref<256x128xbf16, #tpu.memory_space<vmem>>, %arg3: memref<128x128xbf16, #tpu.memory_space<vmem>>, %arg4: memref<128x128xbf16, #tpu.memory_space<vmem>>, %arg5: memref<128x128xbf16, #tpu.memory_space<vmem>>, %arg6: memref<128x128xbf16, #tpu.memory_space<vmem>>, %arg7: memref<128x128xbf16, #tpu.memory_space<vmem>>, %arg8: memref<128x128xbf16, #tpu.memory_space<vmem>>, %arg9: memref<128x128xbf16, #tpu.memory_space<vmem>>, %arg10: memref<8x128xf32, #tpu.memory_space<vmem>>, %arg11: memref<256x128xf32, #tpu.memory_space<vmem>>) attributes {dimension_semantics = [#tpu.dimension_semantics<parallel>], iteration_bounds = array<i64: 1>, scalar_prefetch = 0 : i64, scratch_operands = 0 : i64, tpu.core_type = #tpu.core_type<tc>, window_params = [{transform_indices = @transform_0, window_bounds = array<i64: 256, 128>}, {transform_indices = @transform_1, window_bounds = array<i64: 256, 128>}, {pipeline_mode = #tpu.pipeline_mode<synchronous>, transform_indices = @transform_2, window_bounds = array<i64: 128, 128>}, {pipeline_mode = #tpu.pipeline_mode<synchronous>, transform_indices = @transform_3, window_bounds = array<i64: 128, 128>}, {pipeline_mode = #tpu.pipeline_mode<synchronous>, transform_indices = @transform_4, window_bounds = array<i64: 128, 128>}, {pipeline_mode = #tpu.pipeline_mode<synchronous>, transform_indices = @transform_5, window_bounds = array<i64: 128, 128>}, {pipeline_mode = #tpu.pipeline_mode<synchronous>, transform_indices = @transform_6, window_bounds = array<i64: 128, 128>}, {pipeline_mode = #tpu.pipeline_mode<synchronous>, transform_indices = @transform_7, window_bounds = array<i64: 128, 128>}, {pipeline_mode = #tpu.pipeline_mode<synchronous>, transform_indices = @transform_8, window_bounds = array<i64: 128, 128>}, {pipeline_mode = #tpu.pipeline_mode<synchronous>, transform_indices = @transform_9, window_bounds = array<i64: 8, 128>}, {transform_indices = @transform_10, window_bounds = array<i64: 256, 128>}]} {
    %c0 = arith.constant 0 : index
    %c0_0 = arith.constant 0 : index
    %0 = vector.load %arg2[%c0, %c0_0] : memref<256x128xbf16, #tpu.memory_space<vmem>>, vector<256x128xbf16>
    %c0_1 = arith.constant 0 : index
    %c0_2 = arith.constant 0 : index
    %1 = vector.load %arg1[%c0_1, %c0_2] : memref<256x128xbf16, #tpu.memory_space<vmem>>, vector<256x128xbf16>
    %c0_3 = arith.constant 0 : index
    %c0_4 = arith.constant 0 : index
    %2 = vector.load %arg5[%c0_3, %c0_4] : memref<128x128xbf16, #tpu.memory_space<vmem>>, vector<128x128xbf16>
    %cst = arith.constant dense<0.000000e+00> : vector<256x128xf32>
    %3 = tpu.matmul %0, %2, %cst {dimension_numbers = #tpu.dot_dimension_numbers<[1], [0], [0], [1], [0, 0, 1, 1], [], []>} : vector<256x128xbf16>, vector<128x128xbf16>, vector<256x128xf32> -> vector<256x128xf32>
    %c0_5 = arith.constant 0 : index
    %c0_6 = arith.constant 0 : index
    %4 = vector.load %arg3[%c0_5, %c0_6] : memref<128x128xbf16, #tpu.memory_space<vmem>>, vector<128x128xbf16>
    %cst_7 = arith.constant dense<0.000000e+00> : vector<256x128xf32>
    %5 = tpu.matmul %1, %4, %cst_7 {dimension_numbers = #tpu.dot_dimension_numbers<[1], [0], [0], [1], [0, 0, 1, 1], [], []>} : vector<256x128xbf16>, vector<128x128xbf16>, vector<256x128xf32> -> vector<256x128xf32>
    %c0_8 = arith.constant 0 : index
    %c0_9 = arith.constant 0 : index
    %6 = vector.load %arg10[%c0_8, %c0_9] : memref<8x128xf32, #tpu.memory_space<vmem>>, vector<1x128xf32>
    %7 = vector.broadcast %6 : vector<1x128xf32> to vector<256x128xf32>
    %8 = arith.addf %5, %7 : vector<256x128xf32>
    %cst_10 = arith.constant 0.000000e+00 : f32
    %9 = vector.broadcast %cst_10 : f32 to vector<256x128xf32>
    %10 = arith.maximumf %8, %9 : vector<256x128xf32>
    %11 = arith.truncf %10 : vector<256x128xf32> to vector<256x128xbf16>
    %c0_11 = arith.constant 0 : index
    %c0_12 = arith.constant 0 : index
    %12 = vector.load %arg4[%c0_11, %c0_12] : memref<128x128xbf16, #tpu.memory_space<vmem>>, vector<128x128xbf16>
    %cst_13 = arith.constant dense<0.000000e+00> : vector<256x128xf32>
    %13 = tpu.matmul %11, %12, %cst_13 {dimension_numbers = #tpu.dot_dimension_numbers<[1], [0], [0], [1], [0, 0, 1, 1], [], []>} : vector<256x128xbf16>, vector<128x128xbf16>, vector<256x128xf32> -> vector<256x128xf32>
    %c1 = arith.constant 1 : index
    %c0_14 = arith.constant 0 : index
    %14 = vector.load %arg10[%c1, %c0_14] : memref<8x128xf32, #tpu.memory_space<vmem>>, vector<1x128xf32>
    %15 = vector.broadcast %14 : vector<1x128xf32> to vector<256x128xf32>
    %16 = arith.addf %13, %15 : vector<256x128xf32>
    %17 = arith.truncf %16 : vector<256x128xf32> to vector<256x128xbf16>
    %c0_15 = arith.constant 0 : index
    %c0_16 = arith.constant 0 : index
    %18 = vector.load %arg6[%c0_15, %c0_16] : memref<128x128xbf16, #tpu.memory_space<vmem>>, vector<128x128xbf16>
    %cst_17 = arith.constant dense<0.000000e+00> : vector<256x128xf32>
    %19 = tpu.matmul %17, %18, %cst_17 {dimension_numbers = #tpu.dot_dimension_numbers<[1], [0], [0], [1], [0, 0, 1, 1], [], []>} : vector<256x128xbf16>, vector<128x128xbf16>, vector<256x128xf32> -> vector<256x128xf32>
    %20 = arith.addf %3, %19 : vector<256x128xf32>
    %c2 = arith.constant 2 : index
    %c0_18 = arith.constant 0 : index
    %21 = vector.load %arg10[%c2, %c0_18] : memref<8x128xf32, #tpu.memory_space<vmem>>, vector<1x128xf32>
    %22 = vector.broadcast %21 : vector<1x128xf32> to vector<256x128xf32>
    %23 = arith.addf %20, %22 : vector<256x128xf32>
    %cst_19 = arith.constant 0.000000e+00 : f32
    %24 = vector.broadcast %cst_19 : f32 to vector<256x128xf32>
    %25 = arith.maximumf %23, %24 : vector<256x128xf32>
    %26 = arith.truncf %25 : vector<256x128xf32> to vector<256x128xbf16>
    %c0_20 = arith.constant 0 : index
    %c0_21 = arith.constant 0 : index
    %27 = vector.load %arg7[%c0_20, %c0_21] : memref<128x128xbf16, #tpu.memory_space<vmem>>, vector<128x128xbf16>
    %cst_22 = arith.constant dense<0.000000e+00> : vector<256x128xf32>
    %28 = tpu.matmul %26, %27, %cst_22 {dimension_numbers = #tpu.dot_dimension_numbers<[1], [0], [0], [1], [0, 0, 1, 1], [], []>} : vector<256x128xbf16>, vector<128x128xbf16>, vector<256x128xf32> -> vector<256x128xf32>
    %c3 = arith.constant 3 : index
    %c0_23 = arith.constant 0 : index
    %29 = vector.load %arg10[%c3, %c0_23] : memref<8x128xf32, #tpu.memory_space<vmem>>, vector<1x128xf32>
    %30 = vector.broadcast %29 : vector<1x128xf32> to vector<256x128xf32>
    %31 = arith.addf %28, %30 : vector<256x128xf32>
    %cst_24 = arith.constant 0.000000e+00 : f32
    %32 = vector.broadcast %cst_24 : f32 to vector<256x128xf32>
    %33 = arith.maximumf %31, %32 : vector<256x128xf32>
    %34 = arith.truncf %33 : vector<256x128xf32> to vector<256x128xbf16>
    %c0_25 = arith.constant 0 : index
    %c0_26 = arith.constant 0 : index
    %35 = vector.load %arg8[%c0_25, %c0_26] : memref<128x128xbf16, #tpu.memory_space<vmem>>, vector<128x128xbf16>
    %cst_27 = arith.constant dense<0.000000e+00> : vector<256x128xf32>
    %36 = tpu.matmul %34, %35, %cst_27 {dimension_numbers = #tpu.dot_dimension_numbers<[1], [0], [0], [1], [0, 0, 1, 1], [], []>} : vector<256x128xbf16>, vector<128x128xbf16>, vector<256x128xf32> -> vector<256x128xf32>
    %c4 = arith.constant 4 : index
    %c0_28 = arith.constant 0 : index
    %37 = vector.load %arg10[%c4, %c0_28] : memref<8x128xf32, #tpu.memory_space<vmem>>, vector<1x128xf32>
    %38 = vector.broadcast %37 : vector<1x128xf32> to vector<256x128xf32>
    %39 = arith.addf %36, %38 : vector<256x128xf32>
    %cst_29 = arith.constant 0.000000e+00 : f32
    %40 = vector.broadcast %cst_29 : f32 to vector<256x128xf32>
    %41 = arith.maximumf %39, %40 : vector<256x128xf32>
    %42 = arith.truncf %41 : vector<256x128xf32> to vector<256x128xbf16>
    %c0_30 = arith.constant 0 : index
    %c0_31 = arith.constant 0 : index
    %43 = vector.load %arg9[%c0_30, %c0_31] : memref<128x128xbf16, #tpu.memory_space<vmem>>, vector<128x128xbf16>
    %cst_32 = arith.constant dense<0.000000e+00> : vector<256x128xf32>
    %44 = tpu.matmul %42, %43, %cst_32 {dimension_numbers = #tpu.dot_dimension_numbers<[1], [0], [0], [1], [0, 0, 1, 1], [], []>} : vector<256x128xbf16>, vector<128x128xbf16>, vector<256x128xf32> -> vector<256x128xf32>
    %c5 = arith.constant 5 : index
    %c0_33 = arith.constant 0 : index
    %45 = vector.load %arg10[%c5, %c0_33] : memref<8x128xf32, #tpu.memory_space<vmem>>, vector<1x128xf32>
    %46 = vector.broadcast %45 : vector<1x128xf32> to vector<256x128xf32>
    %47 = arith.addf %44, %46 : vector<256x128xf32>
    %c0_34 = arith.constant 0 : index
    %c0_35 = arith.constant 0 : index
    %48 = vector.load %arg11[%c0_34, %c0_35] : memref<256x128xf32, #tpu.memory_space<vmem>>, vector<256x128xf32>
    tpu.vector_store %arg11[%c0_34, %c0_35], %47 {strides = array<i32>} : memref<256x128xf32, #tpu.memory_space<vmem>>, vector<256x128xf32>,
    return
  }
  func.func @transform_0(%arg0: i32) -> (i32, i32) {
    %c0_i32 = arith.constant 0 : i32
    %c0_i32_0 = arith.constant 0 : i32
    return %arg0, %c0_i32 : i32, i32
  }
  func.func @transform_1(%arg0: i32) -> (i32, i32) {
    %c0_i32 = arith.constant 0 : i32
    %c0_i32_0 = arith.constant 0 : i32
    return %arg0, %c0_i32 : i32, i32
  }
  func.func @transform_2(%arg0: i32) -> (i32, i32) {
    %c0_i32 = arith.constant 0 : i32
    %c0_i32_0 = arith.constant 0 : i32
    %c0_i32_1 = arith.constant 0 : i32
    return %c0_i32, %c0_i32_0 : i32, i32
  }
  func.func @transform_3(%arg0: i32) -> (i32, i32) {
    %c0_i32 = arith.constant 0 : i32
    %c0_i32_0 = arith.constant 0 : i32
    %c0_i32_1 = arith.constant 0 : i32
    return %c0_i32, %c0_i32_0 : i32, i32
  }
  func.func @transform_4(%arg0: i32) -> (i32, i32) {
    %c0_i32 = arith.constant 0 : i32
    %c0_i32_0 = arith.constant 0 : i32
    %c0_i32_1 = arith.constant 0 : i32
    return %c0_i32, %c0_i32_0 : i32, i32
  }
  func.func @transform_5(%arg0: i32) -> (i32, i32) {
    %c0_i32 = arith.constant 0 : i32
    %c0_i32_0 = arith.constant 0 : i32
    %c0_i32_1 = arith.constant 0 : i32
    return %c0_i32, %c0_i32_0 : i32, i32
  }
  func.func @transform_6(%arg0: i32) -> (i32, i32) {
    %c0_i32 = arith.constant 0 : i32
    %c0_i32_0 = arith.constant 0 : i32
    %c0_i32_1 = arith.constant 0 : i32
    return %c0_i32, %c0_i32_0 : i32, i32
  }
  func.func @transform_7(%arg0: i32) -> (i32, i32) {
    %c0_i32 = arith.constant 0 : i32
    %c0_i32_0 = arith.constant 0 : i32
    %c0_i32_1 = arith.constant 0 : i32
    return %c0_i32, %c0_i32_0 : i32, i32
  }
  func.func @transform_8(%arg0: i32) -> (i32, i32) {
    %c0_i32 = arith.constant 0 : i32
    %c0_i32_0 = arith.constant 0 : i32
    %c0_i32_1 = arith.constant 0 : i32
    return %c0_i32, %c0_i32_0 : i32, i32
  }
  func.func @transform_9(%arg0: i32) -> (i32, i32) {
    %c0_i32 = arith.constant 0 : i32
    %c0_i32_0 = arith.constant 0 : i32
    %c0_i32_1 = arith.constant 0 : i32
    return %c0_i32, %c0_i32_0 : i32, i32
  }
  func.func @transform_10(%arg0: i32) -> (i32, i32) {
    %c0_i32 = arith.constant 0 : i32
    %c0_i32_0 = arith.constant 0 : i32
    return %arg0, %c0_i32 : i32, i32
  }
}

</mosaic_0001>

<llo_original>
// kernel: _mapper_impl.1
$region0: #{_mapper_impl.1}
  #allocation0 [shape = 'u32[]', space=smem, size = 0x4, offset = 0x4, fixed_abs, tag = 'smem constant byte address 0x4 - core index']
  #allocation1 [shape = 'u32[72,128]{1,0:T(1,128)}', space=vmem, size = 0x9000, scoped, tag = 'internal scratch']
  %s0 = inlined_call_operand.vmem [shape: bf16[256,128], index: 0, kind: input, shape index: {}]
  %s1 = inlined_call_operand.vmem [shape: bf16[256,128], index: 1, kind: input, shape index: {}]
  %s2 = inlined_call_operand.vmem [shape: bf16[128,128], index: 2, kind: input, shape index: {}]
  %s3 = inlined_call_operand.vmem [shape: bf16[128,128], index: 3, kind: input, shape index: {}]
  %s4 = inlined_call_operand.vmem [shape: bf16[128,128], index: 4, kind: input, shape index: {}]
  %s5 = inlined_call_operand.vmem [shape: bf16[128,128], index: 5, kind: input, shape index: {}]
  %s6 = inlined_call_operand.vmem [shape: bf16[128,128], index: 6, kind: input, shape index: {}]
  %s7 = inlined_call_operand.vmem [shape: bf16[128,128], index: 7, kind: input, shape index: {}]
  %s8 = inlined_call_operand.vmem [shape: bf16[128,128], index: 8, kind: input, shape index: {}]
  %s9 = inlined_call_operand.vmem [shape: f32[8,128], index: 9, kind: input, shape index: {}]
  %s10 = inlined_call_operand.vmem [shape: f32[256,128], index: 10, kind: output, shape index: {}]
  %s11 = sld [smem:[#allocation0]]
  $region50: #{_mapper_impl.1} parent=0
    _
  %s13 = ssub.s32 1, %s11
  %s14 = scalar_select 0, %s13, %s11
  // Predicated region
  $region2: #{_mapper_impl.1} parent=0 // pred_check
    _
  $region3: #{_mapper_impl.1} parent=0 // pred_check_branch
    %16 = sbr.rel (0) target = $region5
  $region4: #{_mapper_impl.1} parent=0 // pred_region
    _
  $region5: #{_mapper_impl.1} parent=0 // pred_fallthru
    _
  // Predicated region
  $region6: #{_mapper_impl.1} parent=0 // pred_check
    _
  $region7: #{_mapper_impl.1} parent=0 // pred_check_branch
    %18 = sbr.rel (0) target = $region9
  $region8: #{_mapper_impl.1} parent=0 // pred_region
    _
  $region9: #{_mapper_impl.1} parent=0 // pred_fallthru
    _
  // Predicated region
  $region10: #{_mapper_impl.1} parent=0 // pred_check
    _
  $region11: #{_mapper_impl.1} parent=0 // pred_check_branch
    %20 = sbr.rel (0) target = $region13
  $region12: #{_mapper_impl.1} parent=0 // pred_region
    _
  $region13: #{_mapper_impl.1} parent=0 // pred_fallthru
    _
  // Predicated region
  $region14: #{_mapper_impl.1} parent=0 // pred_check
    _
  $region15: #{_mapper_impl.1} parent=0 // pred_check_branch
    %22 = sbr.rel (0) target = $region17
  $region16: #{_mapper_impl.1} parent=0 // pred_region
    _
  $region17: #{_mapper_impl.1} parent=0 // pred_fallthru
    _
  // Predicated region
  $region18: #{_mapper_impl.1} parent=0 // pred_check
    _
  $region19: #{_mapper_impl.1} parent=0 // pred_check_branch
    %24 = sbr.rel (0) target = $region21
  $region20: #{_mapper_impl.1} parent=0 // pred_region
    _
  $region21: #{_mapper_impl.1} parent=0 // pred_fallthru
    _
  // Predicated region
  $region22: #{_mapper_impl.1} parent=0 // pred_check
    _
  $region23: #{_mapper_impl.1} parent=0 // pred_check_branch
    %26 = sbr.rel (0) target = $region25
  $region24: #{_mapper_impl.1} parent=0 // pred_region
    _
  $region25: #{_mapper_impl.1} parent=0 // pred_fallthru
    _
  // Predicated region
  $region26: #{_mapper_impl.1} parent=0 // pred_check
    _
  $region27: #{_mapper_impl.1} parent=0 // pred_check_branch
    %28 = sbr.rel (0) target = $region29
  $region28: #{_mapper_impl.1} parent=0 // pred_region
    _
  $region29: #{_mapper_impl.1} parent=0 // pred_fallthru
    _
  // Predicated region
  $region30: #{_mapper_impl.1} parent=0 // pred_check
    _
  $region31: #{_mapper_impl.1} parent=0 // pred_check_branch
    %30 = sbr.rel (0) target = $region33
  $region32: #{_mapper_impl.1} parent=0 // pred_region
    _
  $region33: #{_mapper_impl.1} parent=0 // pred_fallthru
    _
  // Predicated region
  $region34: #{_mapper_impl.1} parent=0 // pred_check
    _
  $region35: #{_mapper_impl.1} parent=0 // pred_check_branch
    %32 = sbr.rel (0) target = $region37
  $region36: #{_mapper_impl.1} parent=0 // pred_region
    _
  $region37: #{_mapper_impl.1} parent=0 // pred_fallthru
    _
  // Predicated region
  $region38: #{_mapper_impl.1} parent=0 // pred_check
    _
  $region39: #{_mapper_impl.1} parent=0 // pred_check_branch
    %34 = sbr.rel (0) target = $region41
  $region40: #{_mapper_impl.1} parent=0 // pred_region
    _
  $region41: #{_mapper_impl.1} parent=0 // pred_fallthru
    _
  %v35 = vld [vmem:[%s1] sm:$0xf]
  %v36 = vld [vmem:[%s1 + $0x4] sm:$0xf]
  %v37 = vld [vmem:[%s1 + $0x8] sm:$0xf]
  %v38 = vld [vmem:[%s1 + $0xc] sm:$0xf]
  %v39 = vld [vmem:[%s1 + $0x10] sm:$0xf]
  %v40 = vld [vmem:[%s1 + $0x14] sm:$0xf]
  %v41 = vld [vmem:[%s1 + $0x18] sm:$0xf]
  %v42 = vld [vmem:[%s1 + $0x1c] sm:$0xf]
  %v43 = vld [vmem:[%s1 + $0x20] sm:$0xf]
  %v44 = vld [vmem:[%s1 + $0x24] sm:$0xf]
  %v45 = vld [vmem:[%s1 + $0x28] sm:$0xf]
  %v46 = vld [vmem:[%s1 + $0x2c] sm:$0xf]
  %v47 = vld [vmem:[%s1 + $0x30] sm:$0xf]
  %v48 = vld [vmem:[%s1 + $0x34] sm:$0xf]
  %v49 = vld [vmem:[%s1 + $0x38] sm:$0xf]
  %v50 = vld [vmem:[%s1 + $0x3c] sm:$0xf]
  %v51 = vld [vmem:[%s1 + $0x40] sm:$0xf]
  %v52 = vld [vmem:[%s1 + $0x44] sm:$0xf]
  %v53 = vld [vmem:[%s1 + $0x48] sm:$0xf]
  %v54 = vld [vmem:[%s1 + $0x4c] sm:$0xf]
  %v55 = vld [vmem:[%s1 + $0x50] sm:$0xf]
  %v56 = vld [vmem:[%s1 + $0x54] sm:$0xf]
  %v57 = vld [vmem:[%s1 + $0x58] sm:$0xf]
  %v58 = vld [vmem:[%s1 + $0x5c] sm:$0xf]
  %v59 = vld [vmem:[%s1 + $0x60] sm:$0xf]
  %v60 = vld [vmem:[%s1 + $0x64] sm:$0xf]
  %v61 = vld [vmem:[%s1 + $0x68] sm:$0xf]
  %v62 = vld [vmem:[%s1 + $0x6c] sm:$0xf]
  %v63 = vld [vmem:[%s1 + $0x70] sm:$0xf]
  %v64 = vld [vmem:[%s1 + $0x74] sm:$0xf]
  %v65 = vld [vmem:[%s1 + $0x78] sm:$0xf]
  %v66 = vld [vmem:[%s1 + $0x7c] sm:$0xf]
  %v67 = vld [vmem:[%s0] sm:$0xf]
  %v68 = vld [vmem:[%s0 + $0x4] sm:$0xf]
  %v69 = vld [vmem:[%s0 + $0x8] sm:$0xf]
  %v70 = vld [vmem:[%s0 + $0xc] sm:$0xf]
  %v71 = vld [vmem:[%s0 + $0x10] sm:$0xf]
  %v72 = vld [vmem:[%s0 + $0x14] sm:$0xf]
  %v73 = vld [vmem:[%s0 + $0x18] sm:$0xf]
  %v74 = vld [vmem:[%s0 + $0x1c] sm:$0xf]
  %v75 = vld [vmem:[%s0 + $0x20] sm:$0xf]
  %v76 = vld [vmem:[%s0 + $0x24] sm:$0xf]
  %v77 = vld [vmem:[%s0 + $0x28] sm:$0xf]
  %v78 = vld [vmem:[%s0 + $0x2c] sm:$0xf]
  %v79 = vld [vmem:[%s0 + $0x30] sm:$0xf]
  %v80 = vld [vmem:[%s0 + $0x34] sm:$0xf]
  %v81 = vld [vmem:[%s0 + $0x38] sm:$0xf]
  %v82 = vld [vmem:[%s0 + $0x3c] sm:$0xf]
  %v83 = vld [vmem:[%s0 + $0x40] sm:$0xf]
  %v84 = vld [vmem:[%s0 + $0x44] sm:$0xf]
  %v85 = vld [vmem:[%s0 + $0x48] sm:$0xf]
  %v86 = vld [vmem:[%s0 + $0x4c] sm:$0xf]
  %v87 = vld [vmem:[%s0 + $0x50] sm:$0xf]
  %v88 = vld [vmem:[%s0 + $0x54] sm:$0xf]
  %v89 = vld [vmem:[%s0 + $0x58] sm:$0xf]
  %v90 = vld [vmem:[%s0 + $0x5c] sm:$0xf]
  %v91 = vld [vmem:[%s0 + $0x60] sm:$0xf]
  %v92 = vld [vmem:[%s0 + $0x64] sm:$0xf]
  %v93 = vld [vmem:[%s0 + $0x68] sm:$0xf]
  %v94 = vld [vmem:[%s0 + $0x6c] sm:$0xf]
  %v95 = vld [vmem:[%s0 + $0x70] sm:$0xf]
  %v96 = vld [vmem:[%s0 + $0x74] sm:$0xf]
  %v97 = vld [vmem:[%s0 + $0x78] sm:$0xf]
  %v98 = vld [vmem:[%s0 + $0x7c] sm:$0xf]
  %v99 = vld [vmem:[%s4] sm:$0xf]
  %v100 = vld [vmem:[%s4 + $0x4] sm:$0xf]
  %v101 = vld [vmem:[%s4 + $0x8] sm:$0xf]
  %v102 = vld [vmem:[%s4 + $0xc] sm:$0xf]
  %v103 = vld [vmem:[%s4 + $0x10] sm:$0xf]
  %v104 = vld [vmem:[%s4 + $0x14] sm:$0xf]
  %v105 = vld [vmem:[%s4 + $0x18] sm:$0xf]
  %v106 = vld [vmem:[%s4 + $0x1c] sm:$0xf]
  %v107 = vld [vmem:[%s4 + $0x20] sm:$0xf]
  %v108 = vld [vmem:[%s4 + $0x24] sm:$0xf]
  %v109 = vld [vmem:[%s4 + $0x28] sm:$0xf]
  %v110 = vld [vmem:[%s4 + $0x2c] sm:$0xf]
  %v111 = vld [vmem:[%s4 + $0x30] sm:$0xf]
  %v112 = vld [vmem:[%s4 + $0x34] sm:$0xf]
  %v113 = vld [vmem:[%s4 + $0x38] sm:$0xf]
  %v114 = vld [vmem:[%s4 + $0x3c] sm:$0xf]
  %v115 = vld [vmem:[%s2] sm:$0xf]
  %v116 = vld [vmem:[%s2 + $0x4] sm:$0xf]
  %v117 = vld [vmem:[%s2 + $0x8] sm:$0xf]
  %v118 = vld [vmem:[%s2 + $0xc] sm:$0xf]
  %v119 = vld [vmem:[%s2 + $0x10] sm:$0xf]
  %v120 = vld [vmem:[%s2 + $0x14] sm:$0xf]
  %v121 = vld [vmem:[%s2 + $0x18] sm:$0xf]
  %v122 = vld [vmem:[%s2 + $0x1c] sm:$0xf]
  %v123 = vld [vmem:[%s2 + $0x20] sm:$0xf]
  %v124 = vld [vmem:[%s2 + $0x24] sm:$0xf]
  %v125 = vld [vmem:[%s2 + $0x28] sm:$0xf]
  %v126 = vld [vmem:[%s2 + $0x2c] sm:$0xf]
  %v127 = vld [vmem:[%s2 + $0x30] sm:$0xf]
  %v128 = vld [vmem:[%s2 + $0x34] sm:$0xf]
  %v129 = vld [vmem:[%s2 + $0x38] sm:$0xf]
  %v130 = vld [vmem:[%s2 + $0x3c] sm:$0xf]
  %v131 = vld [vmem:[%s9] sm:$0x1]
  %v132 = vperm.slane %v131, 0
  %v165 = vunpack.c.l.b16 %v67
  %v166 = vunpack.c.l.b16 %v68
  %v167 = vunpack.c.l.b16 %v69
  %v168 = vunpack.c.l.b16 %v70
  %v169 = vunpack.c.l.b16 %v71
  %v170 = vunpack.c.l.b16 %v72
  %v171 = vunpack.c.l.b16 %v73
  %v172 = vunpack.c.l.b16 %v74
  %v173 = vunpack.c.l.b16 %v75
  %v174 = vunpack.c.l.b16 %v76
  %v175 = vunpack.c.l.b16 %v77
  %v176 = vunpack.c.l.b16 %v78
  %v177 = vunpack.c.l.b16 %v79
  %v178 = vunpack.c.l.b16 %v80
  %v179 = vunpack.c.l.b16 %v81
  %v180 = vunpack.c.l.b16 %v82
  %v181 = vunpack.c.l.b16 %v83
  %v182 = vunpack.c.l.b16 %v84
  %v183 = vunpack.c.l.b16 %v85
  %v184 = vunpack.c.l.b16 %v86
  %v185 = vunpack.c.l.b16 %v87
  %v186 = vunpack.c.l.b16 %v88
  %v187 = vunpack.c.l.b16 %v89
  %v188 = vunpack.c.l.b16 %v90
  %v189 = vunpack.c.l.b16 %v91
  %v190 = vunpack.c.l.b16 %v92
  %v191 = vunpack.c.l.b16 %v93
  %v192 = vunpack.c.l.b16 %v94
  %v193 = vunpack.c.l.b16 %v95
  %v194 = vunpack.c.l.b16 %v96
  %v195 = vunpack.c.l.b16 %v97
  %v196 = vunpack.c.l.b16 %v98
  %v197 = vpack.c.b16 %v166, %v165
  %v198 = vpack.c.b16 %v168, %v167
  %v199 = vpack.c.b16 %v170, %v169
  %v200 = vpack.c.b16 %v172, %v171
  %v201 = vpack.c.b16 %v174, %v173
  %v202 = vpack.c.b16 %v176, %v175
  %v203 = vpack.c.b16 %v178, %v177
  %v204 = vpack.c.b16 %v180, %v179
  %v205 = vpack.c.b16 %v182, %v181
  %v206 = vpack.c.b16 %v184, %v183
  %v207 = vpack.c.b16 %v186, %v185
  %v208 = vpack.c.b16 %v188, %v187
  %v209 = vpack.c.b16 %v190, %v189
  %v210 = vpack.c.b16 %v192, %v191
  %v211 = vpack.c.b16 %v194, %v193
  %v212 = vpack.c.b16 %v196, %v195
  %v245 = vunpack.c.l.b16 %v115
  %v246 = vunpack.c.l.b16 %v116
  %v247 = vunpack.c.l.b16 %v117
  %v248 = vunpack.c.l.b16 %v118
  %v249 = vunpack.c.l.b16 %v119
  %v250 = vunpack.c.l.b16 %v120
  %v251 = vunpack.c.l.b16 %v121
  %v252 = vunpack.c.l.b16 %v122
  %v253 = vunpack.c.l.b16 %v123
  %v254 = vunpack.c.l.b16 %v124
  %v255 = vunpack.c.l.b16 %v125
  %v256 = vunpack.c.l.b16 %v126
  %v257 = vunpack.c.l.b16 %v127
  %v258 = vunpack.c.l.b16 %v128
  %v259 = vunpack.c.l.b16 %v129
  %v260 = vunpack.c.l.b16 %v130
  %v261 = vpack.c.b16 %v246, %v245
  %v262 = vpack.c.b16 %v248, %v247
  %v263 = vpack.c.b16 %v250, %v249
  %v264 = vpack.c.b16 %v252, %v251
  %v265 = vpack.c.b16 %v254, %v253
  %v266 = vpack.c.b16 %v256, %v255
  %v267 = vpack.c.b16 %v258, %v257
  %v268 = vpack.c.b16 %v260, %v259
  %277 = vmatpush.bf16.msra.mxu0 %v268
  %278 = vmatpush.bf16.msra.mxu0 %v267
  %279 = vmatpush.bf16.msra.mxu0 %v266
  %280 = vmatpush.bf16.msra.mxu0 %v265
  %281 = vmatpush.bf16.msra.mxu0 %v264
  %282 = vmatpush.bf16.msra.mxu0 %v263
  %283 = vmatpush.bf16.msra.mxu0 %v262
  %284 = vmatpush.bf16.msra.mxu0 %v261
  %285 = vmatmul.bf16.gmra.mxu0 %v197
  %v286 = vpop.f32.mrf.mxu0
  %v287 = vadd.f32 %v132, %v286
  %v288 = vpop.f32.mrf.mxu0
  %v289 = vadd.f32 %v132, %v288
  %290 = vmatmul.bf16.gmra.mxu0 %v198
  %v291 = vpop.f32.mrf.mxu0
  %v292 = vadd.f32 %v132, %v291
  %v293 = vpop.f32.mrf.mxu0
  %v294 = vadd.f32 %v132, %v293
  %295 = vmatmul.bf16.gmra.mxu0 %v199
  %v296 = vpop.f32.mrf.mxu0
  %v297 = vadd.f32 %v132, %v296
  %v298 = vpop.f32.mrf.mxu0
  %v299 = vadd.f32 %v132, %v298
  %300 = vmatmul.bf16.gmra.mxu0 %v200
  %v301 = vpop.f32.mrf.mxu0
  %v302 = vadd.f32 %v132, %v301
  %v303 = vpop.f32.mrf.mxu0
  %v304 = vadd.f32 %v132, %v303
  %305 = vmatmul.bf16.gmra.mxu0 %v201
  %v306 = vpop.f32.mrf.mxu0
  %v307 = vadd.f32 %v132, %v306
  %v308 = vpop.f32.mrf.mxu0
  %v309 = vadd.f32 %v132, %v308
  %310 = vmatmul.bf16.gmra.mxu0 %v202
  %v311 = vpop.f32.mrf.mxu0
  %v312 = vadd.f32 %v132, %v311
  %v313 = vpop.f32.mrf.mxu0
  %v314 = vadd.f32 %v132, %v313
  %315 = vmatmul.bf16.gmra.mxu0 %v203
  %v316 = vpop.f32.mrf.mxu0
  %v317 = vadd.f32 %v132, %v316
  %v318 = vpop.f32.mrf.mxu0
  %v319 = vadd.f32 %v132, %v318
  %320 = vmatmul.bf16.gmra.mxu0 %v204
  %v321 = vpop.f32.mrf.mxu0
  %v322 = vadd.f32 %v132, %v321
  %v323 = vpop.f32.mrf.mxu0
  %v324 = vadd.f32 %v132, %v323
  %325 = vmatmul.bf16.gmra.mxu0 %v205
  %v326 = vpop.f32.mrf.mxu0
  %v327 = vadd.f32 %v132, %v326
  %v328 = vpop.f32.mrf.mxu0
  %v329 = vadd.f32 %v132, %v328
  %330 = vmatmul.bf16.gmra.mxu0 %v206
  %v331 = vpop.f32.mrf.mxu0
  %v332 = vadd.f32 %v132, %v331
  %v333 = vpop.f32.mrf.mxu0
  %v334 = vadd.f32 %v132, %v333
  %335 = vmatmul.bf16.gmra.mxu0 %v207
  %v336 = vpop.f32.mrf.mxu0
  %v337 = vadd.f32 %v132, %v336
  %v338 = vpop.f32.mrf.mxu0
  %v339 = vadd.f32 %v132, %v338
  %340 = vmatmul.bf16.gmra.mxu0 %v208
  %v341 = vpop.f32.mrf.mxu0
  %v342 = vadd.f32 %v132, %v341
  %v343 = vpop.f32.mrf.mxu0
  %v344 = vadd.f32 %v132, %v343
  %345 = vmatmul.bf16.gmra.mxu0 %v209
  %v346 = vpop.f32.mrf.mxu0
  %v347 = vadd.f32 %v132, %v346
  %v348 = vpop.f32.mrf.mxu0
  %v349 = vadd.f32 %v132, %v348
  %350 = vmatmul.bf16.gmra.mxu0 %v210
  %v351 = vpop.f32.mrf.mxu0
  %v352 = vadd.f32 %v132, %v351
  %v353 = vpop.f32.mrf.mxu0
  %v354 = vadd.f32 %v132, %v353
  %355 = vmatmul.bf16.gmra.mxu0 %v211
  %v356 = vpop.f32.mrf.mxu0
  %v357 = vadd.f32 %v132, %v356
  %v358 = vpop.f32.mrf.mxu0
  %v359 = vadd.f32 %v132, %v358
  %360 = vmatmul.bf16.gmra.mxu0 %v212
  %v361 = vpop.f32.mrf.mxu0
  %v362 = vadd.f32 %v132, %v361
  %v363 = vpop.f32.mrf.mxu0
  %v364 = vadd.f32 %v132, %v363
  %365 = vdwg.mxu0
  %v366 = vmax.f32 %v287, 0.0
  %v367 = vmax.f32 %v289, 0.0
  %v368 = vmax.f32 %v292, 0.0
  %v369 = vmax.f32 %v294, 0.0
  %v370 = vmax.f32 %v297, 0.0
  %v371 = vmax.f32 %v299, 0.0
  %v372 = vmax.f32 %v302, 0.0
  %v373 = vmax.f32 %v304, 0.0
  %v374 = vmax.f32 %v307, 0.0
  %v375 = vmax.f32 %v309, 0.0
  %v376 = vmax.f32 %v312, 0.0
  %v377 = vmax.f32 %v314, 0.0
  %v378 = vmax.f32 %v317, 0.0
  %v379 = vmax.f32 %v319, 0.0
  %v380 = vmax.f32 %v322, 0.0
  %v381 = vmax.f32 %v324, 0.0
  %v382 = vmax.f32 %v327, 0.0
  %v383 = vmax.f32 %v329, 0.0
  %v384 = vmax.f32 %v332, 0.0
  %v385 = vmax.f32 %v334, 0.0
  %v386 = vmax.f32 %v337, 0.0
  %v387 = vmax.f32 %v339, 0.0
  %v388 = vmax.f32 %v342, 0.0
  %v389 = vmax.f32 %v344, 0.0
  %v390 = vmax.f32 %v347, 0.0
  %v391 = vmax.f32 %v349, 0.0
  %v392 = vmax.f32 %v352, 0.0
  %v393 = vmax.f32 %v354, 0.0
  %v394 = vmax.f32 %v357, 0.0
  %v395 = vmax.f32 %v359, 0.0
  %v396 = vmax.f32 %v362, 0.0
  %v397 = vmax.f32 %v364, 0.0
  %v398 = vpack.c.bf16 %v367, %v366
  %v399 = vpack.c.bf16 %v369, %v368
  %v400 = vpack.c.bf16 %v371, %v370
  %v401 = vpack.c.bf16 %v373, %v372
  %v402 = vpack.c.bf16 %v375, %v374
  %v403 = vpack.c.bf16 %v377, %v376
  %v404 = vpack.c.bf16 %v379, %v378
  %v405 = vpack.c.bf16 %v381, %v380
  %v406 = vpack.c.bf16 %v383, %v382
  %v407 = vpack.c.bf16 %v385, %v384
  %v408 = vpack.c.bf16 %v387, %v386
  %v409 = vpack.c.bf16 %v389, %v388
  %v410 = vpack.c.bf16 %v391, %v390
  %v411 = vpack.c.bf16 %v393, %v392
  %v412 = vpack.c.bf16 %v395, %v394
  %v413 = vpack.c.bf16 %v397, %v396
  %v414 = vld [vmem:[%s3] sm:$0xf]
  %v415 = vld [vmem:[%s3 + $0x4] sm:$0xf]
  %v416 = vld [vmem:[%s3 + $0x8] sm:$0xf]
  %v417 = vld [vmem:[%s3 + $0xc] sm:$0xf]
  %v418 = vld [vmem:[%s3 + $0x10] sm:$0xf]
  %v419 = vld [vmem:[%s3 + $0x14] sm:$0xf]
  %v420 = vld [vmem:[%s3 + $0x18] sm:$0xf]
  %v421 = vld [vmem:[%s3 + $0x1c] sm:$0xf]
  %v422 = vld [vmem:[%s3 + $0x20] sm:$0xf]
  %v423 = vld [vmem:[%s3 + $0x24] sm:$0xf]
  %v424 = vld [vmem:[%s3 + $0x28] sm:$0xf]
  %v425 = vld [vmem:[%s3 + $0x2c] sm:$0xf]
  %v426 = vld [vmem:[%s3 + $0x30] sm:$0xf]
  %v427 = vld [vmem:[%s3 + $0x34] sm:$0xf]
  %v428 = vld [vmem:[%s3 + $0x38] sm:$0xf]
  %v429 = vld [vmem:[%s3 + $0x3c] sm:$0xf]
  %v430 = vld [vmem:[%s9 + $0x1] sm:$0x1]
  %v431 = vperm.slane %v430, 0
  %v448 = vunpack.c.l.b16 %v414
  %v449 = vunpack.c.l.b16 %v415
  %v450 = vunpack.c.l.b16 %v416
  %v451 = vunpack.c.l.b16 %v417
  %v452 = vunpack.c.l.b16 %v418
  %v453 = vunpack.c.l.b16 %v419
  %v454 = vunpack.c.l.b16 %v420
  %v455 = vunpack.c.l.b16 %v421
  %v456 = vunpack.c.l.b16 %v422
  %v457 = vunpack.c.l.b16 %v423
  %v458 = vunpack.c.l.b16 %v424
  %v459 = vunpack.c.l.b16 %v425
  %v460 = vunpack.c.l.b16 %v426
  %v461 = vunpack.c.l.b16 %v427
  %v462 = vunpack.c.l.b16 %v428
  %v463 = vunpack.c.l.b16 %v429
  %v464 = vpack.c.b16 %v449, %v448
  %v465 = vpack.c.b16 %v451, %v450
  %v466 = vpack.c.b16 %v453, %v452
  %v467 = vpack.c.b16 %v455, %v454
  %v468 = vpack.c.b16 %v457, %v456
  %v469 = vpack.c.b16 %v459, %v458
  %v470 = vpack.c.b16 %v461, %v460
  %v471 = vpack.c.b16 %v463, %v462
  %480 = vmatpush.bf16.msra.mxu0 %v471
  %481 = vmatpush.bf16.msra.mxu0 %v470
  %482 = vmatpush.bf16.msra.mxu0 %v469
  %483 = vmatpush.bf16.msra.mxu0 %v468
  %484 = vmatpush.bf16.msra.mxu0 %v467
  %485 = vmatpush.bf16.msra.mxu0 %v466
  %486 = vmatpush.bf16.msra.mxu0 %v465
  %487 = vmatpush.bf16.msra.mxu0 %v464
  %488 = vmatmul.bf16.gmra.mxu0 %v398
  %v489 = vpop.f32.mrf.mxu0
  %v490 = vadd.f32 %v431, %v489
  %v491 = vpop.f32.mrf.mxu0
  %v492 = vadd.f32 %v431, %v491
  %493 = vmatmul.bf16.gmra.mxu0 %v399
  %v494 = vpop.f32.mrf.mxu0
  %v495 = vadd.f32 %v431, %v494
  %v496 = vpop.f32.mrf.mxu0
  %v497 = vadd.f32 %v431, %v496
  %498 = vmatmul.bf16.gmra.mxu0 %v400
  %v499 = vpop.f32.mrf.mxu0
  %v500 = vadd.f32 %v431, %v499
  %v501 = vpop.f32.mrf.mxu0
  %v502 = vadd.f32 %v431, %v501
  %503 = vmatmul.bf16.gmra.mxu0 %v401
  %v504 = vpop.f32.mrf.mxu0
  %v505 = vadd.f32 %v431, %v504
  %v506 = vpop.f32.mrf.mxu0
  %v507 = vadd.f32 %v431, %v506
  %508 = vmatmul.bf16.gmra.mxu0 %v402
  %v509 = vpop.f32.mrf.mxu0
  %v510 = vadd.f32 %v431, %v509
  %v511 = vpop.f32.mrf.mxu0
  %v512 = vadd.f32 %v431, %v511
  %513 = vmatmul.bf16.gmra.mxu0 %v403
  %v514 = vpop.f32.mrf.mxu0
  %v515 = vadd.f32 %v431, %v514
  %v516 = vpop.f32.mrf.mxu0
  %v517 = vadd.f32 %v431, %v516
  %518 = vmatmul.bf16.gmra.mxu0 %v404
  %v519 = vpop.f32.mrf.mxu0
  %v520 = vadd.f32 %v431, %v519
  %v521 = vpop.f32.mrf.mxu0
  %v522 = vadd.f32 %v431, %v521
  %523 = vmatmul.bf16.gmra.mxu0 %v405
  %v524 = vpop.f32.mrf.mxu0
  %v525 = vadd.f32 %v431, %v524
  %v526 = vpop.f32.mrf.mxu0
  %v527 = vadd.f32 %v431, %v526
  %528 = vmatmul.bf16.gmra.mxu0 %v406
  %v529 = vpop.f32.mrf.mxu0
  %v530 = vadd.f32 %v431, %v529
  %v531 = vpop.f32.mrf.mxu0
  %v532 = vadd.f32 %v431, %v531
  %533 = vmatmul.bf16.gmra.mxu0 %v407
  %v534 = vpop.f32.mrf.mxu0
  %v535 = vadd.f32 %v431, %v534
  %v536 = vpop.f32.mrf.mxu0
  %v537 = vadd.f32 %v431, %v536
  %538 = vmatmul.bf16.gmra.mxu0 %v408
  %v539 = vpop.f32.mrf.mxu0
  %v540 = vadd.f32 %v431, %v539
  %v541 = vpop.f32.mrf.mxu0
  %v542 = vadd.f32 %v431, %v541
  %543 = vmatmul.bf16.gmra.mxu0 %v409
  %v544 = vpop.f32.mrf.mxu0
  %v545 = vadd.f32 %v431, %v544
  %v546 = vpop.f32.mrf.mxu0
  %v547 = vadd.f32 %v431, %v546
  %548 = vmatmul.bf16.gmra.mxu0 %v410
  %v549 = vpop.f32.mrf.mxu0
  %v550 = vadd.f32 %v431, %v549
  %v551 = vpop.f32.mrf.mxu0
  %v552 = vadd.f32 %v431, %v551
  %553 = vmatmul.bf16.gmra.mxu0 %v411
  %v554 = vpop.f32.mrf.mxu0
  %v555 = vadd.f32 %v431, %v554
  %v556 = vpop.f32.mrf.mxu0
  %v557 = vadd.f32 %v431, %v556
  %558 = vmatmul.bf16.gmra.mxu0 %v412
  %v559 = vpop.f32.mrf.mxu0
  %v560 = vadd.f32 %v431, %v559
  %v561 = vpop.f32.mrf.mxu0
  %v562 = vadd.f32 %v431, %v561
  %563 = vmatmul.bf16.gmra.mxu0 %v413
  %v564 = vpop.f32.mrf.mxu0
  %v565 = vadd.f32 %v431, %v564
  %v566 = vpop.f32.mrf.mxu0
  %v567 = vadd.f32 %v431, %v566
  %568 = vdwg.mxu0
  %v569 = vpack.c.bf16 %v492, %v490
  %v570 = vpack.c.bf16 %v497, %v495
  %v571 = vpack.c.bf16 %v502, %v500
  %v572 = vpack.c.bf16 %v507, %v505
  %v573 = vpack.c.bf16 %v512, %v510
  %v574 = vpack.c.bf16 %v517, %v515
  %v575 = vpack.c.bf16 %v522, %v520
  %v576 = vpack.c.bf16 %v527, %v525
  %v577 = vpack.c.bf16 %v532, %v530
  %v578 = vpack.c.bf16 %v537, %v535
  %v579 = vpack.c.bf16 %v542, %v540
  %v580 = vpack.c.bf16 %v547, %v545
  %v581 = vpack.c.bf16 %v552, %v550
  %v582 = vpack.c.bf16 %v557, %v555
  %v583 = vpack.c.bf16 %v562, %v560
  %v584 = vpack.c.bf16 %v567, %v565
  %v585 = vld [vmem:[%s5] sm:$0xf]
  %v586 = vld [vmem:[%s5 + $0x4] sm:$0xf]
  %v587 = vld [vmem:[%s5 + $0x8] sm:$0xf]
  %v588 = vld [vmem:[%s5 + $0xc] sm:$0xf]
  %v589 = vld [vmem:[%s5 + $0x10] sm:$0xf]
  %v590 = vld [vmem:[%s5 + $0x14] sm:$0xf]
  %v591 = vld [vmem:[%s5 + $0x18] sm:$0xf]
  %v592 = vld [vmem:[%s5 + $0x1c] sm:$0xf]
  %v593 = vld [vmem:[%s5 + $0x20] sm:$0xf]
  %v594 = vld [vmem:[%s5 + $0x24] sm:$0xf]
  %v595 = vld [vmem:[%s5 + $0x28] sm:$0xf]
  %v596 = vld [vmem:[%s5 + $0x2c] sm:$0xf]
  %v597 = vld [vmem:[%s5 + $0x30] sm:$0xf]
  %v598 = vld [vmem:[%s5 + $0x34] sm:$0xf]
  %v599 = vld [vmem:[%s5 + $0x38] sm:$0xf]
  %v600 = vld [vmem:[%s5 + $0x3c] sm:$0xf]
  %v617 = vunpack.c.l.b16 %v585
  %v618 = vunpack.c.l.b16 %v586
  %v619 = vunpack.c.l.b16 %v587
  %v620 = vunpack.c.l.b16 %v588
  %v621 = vunpack.c.l.b16 %v589
  %v622 = vunpack.c.l.b16 %v590
  %v623 = vunpack.c.l.b16 %v591
  %v624 = vunpack.c.l.b16 %v592
  %v625 = vunpack.c.l.b16 %v593
  %v626 = vunpack.c.l.b16 %v594
  %v627 = vunpack.c.l.b16 %v595
  %v628 = vunpack.c.l.b16 %v596
  %v629 = vunpack.c.l.b16 %v597
  %v630 = vunpack.c.l.b16 %v598
  %v631 = vunpack.c.l.b16 %v599
  %v632 = vunpack.c.l.b16 %v600
  %v633 = vpack.c.b16 %v618, %v617
  %v634 = vpack.c.b16 %v620, %v619
  %v635 = vpack.c.b16 %v622, %v621
  %v636 = vpack.c.b16 %v624, %v623
  %v637 = vpack.c.b16 %v626, %v625
  %v638 = vpack.c.b16 %v628, %v627
  %v639 = vpack.c.b16 %v630, %v629
  %v640 = vpack.c.b16 %v632, %v631
  %649 = vmatpush.bf16.msra.mxu0 %v640
  %650 = vmatpush.bf16.msra.mxu0 %v639
  %651 = vmatpush.bf16.msra.mxu0 %v638
  %652 = vmatpush.bf16.msra.mxu0 %v637
  %653 = vmatpush.bf16.msra.mxu0 %v636
  %654 = vmatpush.bf16.msra.mxu0 %v635
  %655 = vmatpush.bf16.msra.mxu0 %v634
  %656 = vmatpush.bf16.msra.mxu0 %v633
  %657 = vmatmul.bf16.gmra.mxu0 %v569
  %v658 = vpop.f32.mrf.mxu0
  %v659 = vadd.f32 0.0, %v658
  %v660 = vpop.f32.mrf.mxu0
  %v661 = vadd.f32 0.0, %v660
  %662 = vmatmul.bf16.gmra.mxu0 %v570
  %v663 = vpop.f32.mrf.mxu0
  %v664 = vadd.f32 0.0, %v663
  %v665 = vpop.f32.mrf.mxu0
  %v666 = vadd.f32 0.0, %v665
  %667 = vmatmul.bf16.gmra.mxu0 %v571
  %v668 = vpop.f32.mrf.mxu0
  %v669 = vadd.f32 0.0, %v668
  %v670 = vpop.f32.mrf.mxu0
  %v671 = vadd.f32 0.0, %v670
  %672 = vmatmul.bf16.gmra.mxu0 %v572
  %v673 = vpop.f32.mrf.mxu0
  %v674 = vadd.f32 0.0, %v673
  %v675 = vpop.f32.mrf.mxu0
  %v676 = vadd.f32 0.0, %v675
  %677 = vmatmul.bf16.gmra.mxu0 %v573
  %v678 = vpop.f32.mrf.mxu0
  %v679 = vadd.f32 0.0, %v678
  %v680 = vpop.f32.mrf.mxu0
  %v681 = vadd.f32 0.0, %v680
  %682 = vmatmul.bf16.gmra.mxu0 %v574
  %v683 = vpop.f32.mrf.mxu0
  %v684 = vadd.f32 0.0, %v683
  %v685 = vpop.f32.mrf.mxu0
  %v686 = vadd.f32 0.0, %v685
  %687 = vmatmul.bf16.gmra.mxu0 %v575
  %v688 = vpop.f32.mrf.mxu0
  %v689 = vadd.f32 0.0, %v688
  %v690 = vpop.f32.mrf.mxu0
  %v691 = vadd.f32 0.0, %v690
  %692 = vmatmul.bf16.gmra.mxu0 %v576
  %v693 = vpop.f32.mrf.mxu0
  %v694 = vadd.f32 0.0, %v693
  %v695 = vpop.f32.mrf.mxu0
  %v696 = vadd.f32 0.0, %v695
  %697 = vmatmul.bf16.gmra.mxu0 %v577
  %v698 = vpop.f32.mrf.mxu0
  %v699 = vadd.f32 0.0, %v698
  %v700 = vpop.f32.mrf.mxu0
  %v701 = vadd.f32 0.0, %v700
  %702 = vmatmul.bf16.gmra.mxu0 %v578
  %v703 = vpop.f32.mrf.mxu0
  %v704 = vadd.f32 0.0, %v703
  %v705 = vpop.f32.mrf.mxu0
  %v706 = vadd.f32 0.0, %v705
  %707 = vmatmul.bf16.gmra.mxu0 %v579
  %v708 = vpop.f32.mrf.mxu0
  %v709 = vadd.f32 0.0, %v708
  %v710 = vpop.f32.mrf.mxu0
  %v711 = vadd.f32 0.0, %v710
  %712 = vmatmul.bf16.gmra.mxu0 %v580
  %v713 = vpop.f32.mrf.mxu0
  %v714 = vadd.f32 0.0, %v713
  %v715 = vpop.f32.mrf.mxu0
  %v716 = vadd.f32 0.0, %v715
  %717 = vmatmul.bf16.gmra.mxu0 %v581
  %v718 = vpop.f32.mrf.mxu0
  %v719 = vadd.f32 0.0, %v718
  %v720 = vpop.f32.mrf.mxu0
  %v721 = vadd.f32 0.0, %v720
  %722 = vmatmul.bf16.gmra.mxu0 %v582
  %v723 = vpop.f32.mrf.mxu0
  %v724 = vadd.f32 0.0, %v723
  %v725 = vpop.f32.mrf.mxu0
  %v726 = vadd.f32 0.0, %v725
  %727 = vmatmul.bf16.gmra.mxu0 %v583
  %v728 = vpop.f32.mrf.mxu0
  %v729 = vadd.f32 0.0, %v728
  %v730 = vpop.f32.mrf.mxu0
  %v731 = vadd.f32 0.0, %v730
  %732 = vmatmul.bf16.gmra.mxu0 %v584
  %v733 = vpop.f32.mrf.mxu0
  %v734 = vadd.f32 0.0, %v733
  %v735 = vpop.f32.mrf.mxu0
  %v736 = vadd.f32 0.0, %v735
  %737 = vdwg.mxu0
  %v770 = vunpack.c.l.b16 %v35
  %v771 = vunpack.c.l.b16 %v36
  %v772 = vunpack.c.l.b16 %v37
  %v773 = vunpack.c.l.b16 %v38
  %v774 = vunpack.c.l.b16 %v39
  %v775 = vunpack.c.l.b16 %v40
  %v776 = vunpack.c.l.b16 %v41
  %v777 = vunpack.c.l.b16 %v42
  %v778 = vunpack.c.l.b16 %v43
  %v779 = vunpack.c.l.b16 %v44
  %v780 = vunpack.c.l.b16 %v45
  %v781 = vunpack.c.l.b16 %v46
  %v782 = vunpack.c.l.b16 %v47
  %v783 = vunpack.c.l.b16 %v48
  %v784 = vunpack.c.l.b16 %v49
  %v785 = vunpack.c.l.b16 %v50
  %v786 = vunpack.c.l.b16 %v51
  %v787 = vunpack.c.l.b16 %v52
  %v788 = vunpack.c.l.b16 %v53
  %v789 = vunpack.c.l.b16 %v54
  %v790 = vunpack.c.l.b16 %v55
  %v791 = vunpack.c.l.b16 %v56
  %v792 = vunpack.c.l.b16 %v57
  %v793 = vunpack.c.l.b16 %v58
  %v794 = vunpack.c.l.b16 %v59
  %v795 = vunpack.c.l.b16 %v60
  %v796 = vunpack.c.l.b16 %v61
  %v797 = vunpack.c.l.b16 %v62
  %v798 = vunpack.c.l.b16 %v63
  %v799 = vunpack.c.l.b16 %v64
  %v800 = vunpack.c.l.b16 %v65
  %v801 = vunpack.c.l.b16 %v66
  %v802 = vpack.c.b16 %v771, %v770
  %v803 = vpack.c.b16 %v773, %v772
  %v804 = vpack.c.b16 %v775, %v774
  %v805 = vpack.c.b16 %v777, %v776
  %v806 = vpack.c.b16 %v779, %v778
  %v807 = vpack.c.b16 %v781, %v780
  %v808 = vpack.c.b16 %v783, %v782
  %v809 = vpack.c.b16 %v785, %v784
  %v810 = vpack.c.b16 %v787, %v786
  %v811 = vpack.c.b16 %v789, %v788
  %v812 = vpack.c.b16 %v791, %v790
  %v813 = vpack.c.b16 %v793, %v792
  %v814 = vpack.c.b16 %v795, %v794
  %v815 = vpack.c.b16 %v797, %v796
  %v816 = vpack.c.b16 %v799, %v798
  %v817 = vpack.c.b16 %v801, %v800
  %v850 = vunpack.c.l.b16 %v99
  %v851 = vunpack.c.l.b16 %v100
  %v852 = vunpack.c.l.b16 %v101
  %v853 = vunpack.c.l.b16 %v102
  %v854 = vunpack.c.l.b16 %v103
  %v855 = vunpack.c.l.b16 %v104
  %v856 = vunpack.c.l.b16 %v105
  %v857 = vunpack.c.l.b16 %v106
  %v858 = vunpack.c.l.b16 %v107
  %v859 = vunpack.c.l.b16 %v108
  %v860 = vunpack.c.l.b16 %v109
  %v861 = vunpack.c.l.b16 %v110
  %v862 = vunpack.c.l.b16 %v111
  %v863 = vunpack.c.l.b16 %v112
  %v864 = vunpack.c.l.b16 %v113
  %v865 = vunpack.c.l.b16 %v114
  %v866 = vpack.c.b16 %v851, %v850
  %v867 = vpack.c.b16 %v853, %v852
  %v868 = vpack.c.b16 %v855, %v854
  %v869 = vpack.c.b16 %v857, %v856
  %v870 = vpack.c.b16 %v859, %v858
  %v871 = vpack.c.b16 %v861, %v860
  %v872 = vpack.c.b16 %v863, %v862
  %v873 = vpack.c.b16 %v865, %v864
  %882 = vmatpush.bf16.msra.mxu0 %v873
  %883 = vmatpush.bf16.msra.mxu0 %v872
  %884 = vmatpush.bf16.msra.mxu0 %v871
  %885 = vmatpush.bf16.msra.mxu0 %v870
  %886 = vmatpush.bf16.msra.mxu0 %v869
  %887 = vmatpush.bf16.msra.mxu0 %v868
  %888 = vmatpush.bf16.msra.mxu0 %v867
  %889 = vmatpush.bf16.msra.mxu0 %v866
  %890 = vmatmul.bf16.gmra.mxu0 %v802
  %v891 = vpop.f32.mrf.mxu0
  %v892 = vadd.f32 %v659, %v891
  %v893 = vpop.f32.mrf.mxu0
  %v894 = vadd.f32 %v661, %v893
  %895 = vmatmul.bf16.gmra.mxu0 %v803
  %v896 = vpop.f32.mrf.mxu0
  %v897 = vadd.f32 %v664, %v896
  %v898 = vpop.f32.mrf.mxu0
  %v899 = vadd.f32 %v666, %v898
  %900 = vmatmul.bf16.gmra.mxu0 %v804
  %v901 = vpop.f32.mrf.mxu0
  %v902 = vadd.f32 %v669, %v901
  %v903 = vpop.f32.mrf.mxu0
  %v904 = vadd.f32 %v671, %v903
  %905 = vmatmul.bf16.gmra.mxu0 %v805
  %v906 = vpop.f32.mrf.mxu0
  %v907 = vadd.f32 %v674, %v906
  %v908 = vpop.f32.mrf.mxu0
  %v909 = vadd.f32 %v676, %v908
  %910 = vmatmul.bf16.gmra.mxu0 %v806
  %v911 = vpop.f32.mrf.mxu0
  %v912 = vadd.f32 %v679, %v911
  %v913 = vpop.f32.mrf.mxu0
  %v914 = vadd.f32 %v681, %v913
  %915 = vmatmul.bf16.gmra.mxu0 %v807
  %v916 = vpop.f32.mrf.mxu0
  %v917 = vadd.f32 %v684, %v916
  %v918 = vpop.f32.mrf.mxu0
  %v919 = vadd.f32 %v686, %v918
  %920 = vmatmul.bf16.gmra.mxu0 %v808
  %v921 = vpop.f32.mrf.mxu0
  %v922 = vadd.f32 %v689, %v921
  %v923 = vpop.f32.mrf.mxu0
  %v924 = vadd.f32 %v691, %v923
  %925 = vmatmul.bf16.gmra.mxu0 %v809
  %v926 = vpop.f32.mrf.mxu0
  %v927 = vadd.f32 %v694, %v926
  %v928 = vpop.f32.mrf.mxu0
  %v929 = vadd.f32 %v696, %v928
  %930 = vmatmul.bf16.gmra.mxu0 %v810
  %v931 = vpop.f32.mrf.mxu0
  %v932 = vadd.f32 %v699, %v931
  %v933 = vpop.f32.mrf.mxu0
  %v934 = vadd.f32 %v701, %v933
  %935 = vmatmul.bf16.gmra.mxu0 %v811
  %v936 = vpop.f32.mrf.mxu0
  %v937 = vadd.f32 %v704, %v936
  %v938 = vpop.f32.mrf.mxu0
  %v939 = vadd.f32 %v706, %v938
  %940 = vmatmul.bf16.gmra.mxu0 %v812
  %v941 = vpop.f32.mrf.mxu0
  %v942 = vadd.f32 %v709, %v941
  %v943 = vpop.f32.mrf.mxu0
  %v944 = vadd.f32 %v711, %v943
  %945 = vmatmul.bf16.gmra.mxu0 %v813
  %v946 = vpop.f32.mrf.mxu0
  %v947 = vadd.f32 %v714, %v946
  %v948 = vpop.f32.mrf.mxu0
  %v949 = vadd.f32 %v716, %v948
  %950 = vmatmul.bf16.gmra.mxu0 %v814
  %v951 = vpop.f32.mrf.mxu0
  %v952 = vadd.f32 %v719, %v951
  %v953 = vpop.f32.mrf.mxu0
  %v954 = vadd.f32 %v721, %v953
  %955 = vmatmul.bf16.gmra.mxu0 %v815
  %v956 = vpop.f32.mrf.mxu0
  %v957 = vadd.f32 %v724, %v956
  %v958 = vpop.f32.mrf.mxu0
  %v959 = vadd.f32 %v726, %v958
  %960 = vmatmul.bf16.gmra.mxu0 %v816
  %v961 = vpop.f32.mrf.mxu0
  %v962 = vadd.f32 %v729, %v961
  %v963 = vpop.f32.mrf.mxu0
  %v964 = vadd.f32 %v731, %v963
  %965 = vmatmul.bf16.gmra.mxu0 %v817
  %v966 = vpop.f32.mrf.mxu0
  %v967 = vadd.f32 %v734, %v966
  %v968 = vpop.f32.mrf.mxu0
  %v969 = vadd.f32 %v736, %v968
  %970 = vdwg.mxu0
  %v971 = vld [vmem:[%s9 + $0x2] sm:$0x1]
  %v972 = vperm.slane %v971, 0
  %v973 = vadd.f32 %v892, %v972
  %v974 = vadd.f32 %v894, %v972
  %v975 = vadd.f32 %v897, %v972
  %v976 = vadd.f32 %v899, %v972
  %v977 = vadd.f32 %v902, %v972
  %v978 = vadd.f32 %v904, %v972
  %v979 = vadd.f32 %v907, %v972
  %v980 = vadd.f32 %v909, %v972
  %v981 = vadd.f32 %v912, %v972
  %v982 = vadd.f32 %v914, %v972
  %v983 = vadd.f32 %v917, %v972
  %v984 = vadd.f32 %v919, %v972
  %v985 = vadd.f32 %v922, %v972
  %v986 = vadd.f32 %v924, %v972
  %v987 = vadd.f32 %v927, %v972
  %v988 = vadd.f32 %v929, %v972
  %v989 = vadd.f32 %v932, %v972
  %v990 = vadd.f32 %v934, %v972
  %v991 = vadd.f32 %v937, %v972
  %v992 = vadd.f32 %v939, %v972
  %v993 = vadd.f32 %v942, %v972
  %v994 = vadd.f32 %v944, %v972
  %v995 = vadd.f32 %v947, %v972
  %v996 = vadd.f32 %v949, %v972
  %v997 = vadd.f32 %v952, %v972
  %v998 = vadd.f32 %v954, %v972
  %v999 = vadd.f32 %v957, %v972
  %v1000 = vadd.f32 %v959, %v972
  %v1001 = vadd.f32 %v962, %v972
  %v1002 = vadd.f32 %v964, %v972
  %v1003 = vadd.f32 %v967, %v972
  %v1004 = vadd.f32 %v969, %v972
  %v1005 = vmax.f32 %v973, 0.0
  %v1006 = vmax.f32 %v974, 0.0
  %v1007 = vmax.f32 %v975, 0.0
  %v1008 = vmax.f32 %v976, 0.0
  %v1009 = vmax.f32 %v977, 0.0
  %v1010 = vmax.f32 %v978, 0.0
  %v1011 = vmax.f32 %v979, 0.0
  %v1012 = vmax.f32 %v980, 0.0
  %v1013 = vmax.f32 %v981, 0.0
  %v1014 = vmax.f32 %v982, 0.0
  %v1015 = vmax.f32 %v983, 0.0
  %v1016 = vmax.f32 %v984, 0.0
  %v1017 = vmax.f32 %v985, 0.0
  %v1018 = vmax.f32 %v986, 0.0
  %v1019 = vmax.f32 %v987, 0.0
  %v1020 = vmax.f32 %v988, 0.0
  %v1021 = vmax.f32 %v989, 0.0
  %v1022 = vmax.f32 %v990, 0.0
  %v1023 = vmax.f32 %v991, 0.0
  %v1024 = vmax.f32 %v992, 0.0
  %v1025 = vmax.f32 %v993, 0.0
  %v1026 = vmax.f32 %v994, 0.0
  %v1027 = vmax.f32 %v995, 0.0
  %v1028 = vmax.f32 %v996, 0.0
  %v1029 = vmax.f32 %v997, 0.0
  %v1030 = vmax.f32 %v998, 0.0
  %v1031 = vmax.f32 %v999, 0.0
  %v1032 = vmax.f32 %v1000, 0.0
  %v1033 = vmax.f32 %v1001, 0.0
  %v1034 = vmax.f32 %v1002, 0.0
  %v1035 = vmax.f32 %v1003, 0.0
  %v1036 = vmax.f32 %v1004, 0.0
  %v1037 = vpack.c.bf16 %v1006, %v1005
  %v1038 = vpack.c.bf16 %v1008, %v1007
  %v1039 = vpack.c.bf16 %v1010, %v1009
  %v1040 = vpack.c.bf16 %v1012, %v1011
  %v1041 = vpack.c.bf16 %v1014, %v1013
  %v1042 = vpack.c.bf16 %v1016, %v1015
  %v1043 = vpack.c.bf16 %v1018, %v1017
  %v1044 = vpack.c.bf16 %v1020, %v1019
  %v1045 = vpack.c.bf16 %v1022, %v1021
  %v1046 = vpack.c.bf16 %v1024, %v1023
  %v1047 = vpack.c.bf16 %v1026, %v1025
  %v1048 = vpack.c.bf16 %v1028, %v1027
  %v1049 = vpack.c.bf16 %v1030, %v1029
  %v1050 = vpack.c.bf16 %v1032, %v1031
  %v1051 = vpack.c.bf16 %v1034, %v1033
  %v1052 = vpack.c.bf16 %v1036, %v1035
  %v1053 = vld [vmem:[%s6] sm:$0xf]
  %v1054 = vld [vmem:[%s6 + $0x4] sm:$0xf]
  %v1055 = vld [vmem:[%s6 + $0x8] sm:$0xf]
  %v1056 = vld [vmem:[%s6 + $0xc] sm:$0xf]
  %v1057 = vld [vmem:[%s6 + $0x10] sm:$0xf]
  %v1058 = vld [vmem:[%s6 + $0x14] sm:$0xf]
  %v1059 = vld [vmem:[%s6 + $0x18] sm:$0xf]
  %v1060 = vld [vmem:[%s6 + $0x1c] sm:$0xf]
  %v1061 = vld [vmem:[%s6 + $0x20] sm:$0xf]
  %v1062 = vld [vmem:[%s6 + $0x24] sm:$0xf]
  %v1063 = vld [vmem:[%s6 + $0x28] sm:$0xf]
  %v1064 = vld [vmem:[%s6 + $0x2c] sm:$0xf]
  %v1065 = vld [vmem:[%s6 + $0x30] sm:$0xf]
  %v1066 = vld [vmem:[%s6 + $0x34] sm:$0xf]
  %v1067 = vld [vmem:[%s6 + $0x38] sm:$0xf]
  %v1068 = vld [vmem:[%s6 + $0x3c] sm:$0xf]
  %v1069 = vld [vmem:[%s9 + $0x3] sm:$0x1]
  %v1070 = vperm.slane %v1069, 0
  %v1087 = vunpack.c.l.b16 %v1053
  %v1088 = vunpack.c.l.b16 %v1054
  %v1089 = vunpack.c.l.b16 %v1055
  %v1090 = vunpack.c.l.b16 %v1056
  %v1091 = vunpack.c.l.b16 %v1057
  %v1092 = vunpack.c.l.b16 %v1058
  %v1093 = vunpack.c.l.b16 %v1059
  %v1094 = vunpack.c.l.b16 %v1060
  %v1095 = vunpack.c.l.b16 %v1061
  %v1096 = vunpack.c.l.b16 %v1062
  %v1097 = vunpack.c.l.b16 %v1063
  %v1098 = vunpack.c.l.b16 %v1064
  %v1099 = vunpack.c.l.b16 %v1065
  %v1100 = vunpack.c.l.b16 %v1066
  %v1101 = vunpack.c.l.b16 %v1067
  %v1102 = vunpack.c.l.b16 %v1068
  %v1103 = vpack.c.b16 %v1088, %v1087
  %v1104 = vpack.c.b16 %v1090, %v1089
  %v1105 = vpack.c.b16 %v1092, %v1091
  %v1106 = vpack.c.b16 %v1094, %v1093
  %v1107 = vpack.c.b16 %v1096, %v1095
  %v1108 = vpack.c.b16 %v1098, %v1097
  %v1109 = vpack.c.b16 %v1100, %v1099
  %v1110 = vpack.c.b16 %v1102, %v1101
  %1119 = vmatpush.bf16.msra.mxu0 %v1110
  %1120 = vmatpush.bf16.msra.mxu0 %v1109
  %1121 = vmatpush.bf16.msra.mxu0 %v1108
  %1122 = vmatpush.bf16.msra.mxu0 %v1107
  %1123 = vmatpush.bf16.msra.mxu0 %v1106
  %1124 = vmatpush.bf16.msra.mxu0 %v1105
  %1125 = vmatpush.bf16.msra.mxu0 %v1104
  %1126 = vmatpush.bf16.msra.mxu0 %v1103
  %1127 = vmatmul.bf16.gmra.mxu0 %v1037
  %v1128 = vpop.f32.mrf.mxu0
  %v1129 = vadd.f32 %v1070, %v1128
  %v1130 = vpop.f32.mrf.mxu0
  %v1131 = vadd.f32 %v1070, %v1130
  %1132 = vmatmul.bf16.gmra.mxu0 %v1038
  %v1133 = vpop.f32.mrf.mxu0
  %v1134 = vadd.f32 %v1070, %v1133
  %v1135 = vpop.f32.mrf.mxu0
  %v1136 = vadd.f32 %v1070, %v1135
  %1137 = vmatmul.bf16.gmra.mxu0 %v1039
  %v1138 = vpop.f32.mrf.mxu0
  %v1139 = vadd.f32 %v1070, %v1138
  %v1140 = vpop.f32.mrf.mxu0
  %v1141 = vadd.f32 %v1070, %v1140
  %1142 = vmatmul.bf16.gmra.mxu0 %v1040
  %v1143 = vpop.f32.mrf.mxu0
  %v1144 = vadd.f32 %v1070, %v1143
  %v1145 = vpop.f32.mrf.mxu0
  %v1146 = vadd.f32 %v1070, %v1145
  %1147 = vmatmul.bf16.gmra.mxu0 %v1041
  %v1148 = vpop.f32.mrf.mxu0
  %v1149 = vadd.f32 %v1070, %v1148
  %v1150 = vpop.f32.mrf.mxu0
  %v1151 = vadd.f32 %v1070, %v1150
  %1152 = vmatmul.bf16.gmra.mxu0 %v1042
  %v1153 = vpop.f32.mrf.mxu0
  %v1154 = vadd.f32 %v1070, %v1153
  %v1155 = vpop.f32.mrf.mxu0
  %v1156 = vadd.f32 %v1070, %v1155
  %1157 = vmatmul.bf16.gmra.mxu0 %v1043
  %v1158 = vpop.f32.mrf.mxu0
  %v1159 = vadd.f32 %v1070, %v1158
  %v1160 = vpop.f32.mrf.mxu0
  %v1161 = vadd.f32 %v1070, %v1160
  %1162 = vmatmul.bf16.gmra.mxu0 %v1044
  %v1163 = vpop.f32.mrf.mxu0
  %v1164 = vadd.f32 %v1070, %v1163
  %v1165 = vpop.f32.mrf.mxu0
  %v1166 = vadd.f32 %v1070, %v1165
  %1167 = vmatmul.bf16.gmra.mxu0 %v1045
  %v1168 = vpop.f32.mrf.mxu0
  %v1169 = vadd.f32 %v1070, %v1168
  %v1170 = vpop.f32.mrf.mxu0
  %v1171 = vadd.f32 %v1070, %v1170
  %1172 = vmatmul.bf16.gmra.mxu0 %v1046
  %v1173 = vpop.f32.mrf.mxu0
  %v1174 = vadd.f32 %v1070, %v1173
  %v1175 = vpop.f32.mrf.mxu0
  %v1176 = vadd.f32 %v1070, %v1175
  %1177 = vmatmul.bf16.gmra.mxu0 %v1047
  %v1178 = vpop.f32.mrf.mxu0
  %v1179 = vadd.f32 %v1070, %v1178
  %v1180 = vpop.f32.mrf.mxu0
  %v1181 = vadd.f32 %v1070, %v1180
  %1182 = vmatmul.bf16.gmra.mxu0 %v1048
  %v1183 = vpop.f32.mrf.mxu0
  %v1184 = vadd.f32 %v1070, %v1183
  %v1185 = vpop.f32.mrf.mxu0
  %v1186 = vadd.f32 %v1070, %v1185
  %1187 = vmatmul.bf16.gmra.mxu0 %v1049
  %v1188 = vpop.f32.mrf.mxu0
  %v1189 = vadd.f32 %v1070, %v1188
  %v1190 = vpop.f32.mrf.mxu0
  %v1191 = vadd.f32 %v1070, %v1190
  %1192 = vmatmul.bf16.gmra.mxu0 %v1050
  %v1193 = vpop.f32.mrf.mxu0
  %v1194 = vadd.f32 %v1070, %v1193
  %v1195 = vpop.f32.mrf.mxu0
  %v1196 = vadd.f32 %v1070, %v1195
  %1197 = vmatmul.bf16.gmra.mxu0 %v1051
  %v1198 = vpop.f32.mrf.mxu0
  %v1199 = vadd.f32 %v1070, %v1198
  %v1200 = vpop.f32.mrf.mxu0
  %v1201 = vadd.f32 %v1070, %v1200
  %1202 = vmatmul.bf16.gmra.mxu0 %v1052
  %v1203 = vpop.f32.mrf.mxu0
  %v1204 = vadd.f32 %v1070, %v1203
  %v1205 = vpop.f32.mrf.mxu0
  %v1206 = vadd.f32 %v1070, %v1205
  %1207 = vdwg.mxu0
  %v1208 = vmax.f32 %v1129, 0.0
  %v1209 = vmax.f32 %v1131, 0.0
  %v1210 = vmax.f32 %v1134, 0.0
  %v1211 = vmax.f32 %v1136, 0.0
  %v1212 = vmax.f32 %v1139, 0.0
  %v1213 = vmax.f32 %v1141, 0.0
  %v1214 = vmax.f32 %v1144, 0.0
  %v1215 = vmax.f32 %v1146, 0.0
  %v1216 = vmax.f32 %v1149, 0.0
  %v1217 = vmax.f32 %v1151, 0.0
  %v1218 = vmax.f32 %v1154, 0.0
  %v1219 = vmax.f32 %v1156, 0.0
  %v1220 = vmax.f32 %v1159, 0.0
  %v1221 = vmax.f32 %v1161, 0.0
  %v1222 = vmax.f32 %v1164, 0.0
  %v1223 = vmax.f32 %v1166, 0.0
  %v1224 = vmax.f32 %v1169, 0.0
  %v1225 = vmax.f32 %v1171, 0.0
  %v1226 = vmax.f32 %v1174, 0.0
  %v1227 = vmax.f32 %v1176, 0.0
  %v1228 = vmax.f32 %v1179, 0.0
  %v1229 = vmax.f32 %v1181, 0.0
  %v1230 = vmax.f32 %v1184, 0.0
  %v1231 = vmax.f32 %v1186, 0.0
  %v1232 = vmax.f32 %v1189, 0.0
  %v1233 = vmax.f32 %v1191, 0.0
  %v1234 = vmax.f32 %v1194, 0.0
  %v1235 = vmax.f32 %v1196, 0.0
  %v1236 = vmax.f32 %v1199, 0.0
  %v1237 = vmax.f32 %v1201, 0.0
  %v1238 = vmax.f32 %v1204, 0.0
  %v1239 = vmax.f32 %v1206, 0.0
  %v1240 = vpack.c.bf16 %v1209, %v1208
  %v1241 = vpack.c.bf16 %v1211, %v1210
  %v1242 = vpack.c.bf16 %v1213, %v1212
  %v1243 = vpack.c.bf16 %v1215, %v1214
  %v1244 = vpack.c.bf16 %v1217, %v1216
  %v1245 = vpack.c.bf16 %v1219, %v1218
  %v1246 = vpack.c.bf16 %v1221, %v1220
  %v1247 = vpack.c.bf16 %v1223, %v1222
  %v1248 = vpack.c.bf16 %v1225, %v1224
  %v1249 = vpack.c.bf16 %v1227, %v1226
  %v1250 = vpack.c.bf16 %v1229, %v1228
  %v1251 = vpack.c.bf16 %v1231, %v1230
  %v1252 = vpack.c.bf16 %v1233, %v1232
  %v1253 = vpack.c.bf16 %v1235, %v1234
  %v1254 = vpack.c.bf16 %v1237, %v1236
  %v1255 = vpack.c.bf16 %v1239, %v1238
  %v1256 = vld [vmem:[%s7] sm:$0xf]
  %v1257 = vld [vmem:[%s7 + $0x4] sm:$0xf]
  %v1258 = vld [vmem:[%s7 + $0x8] sm:$0xf]
  %v1259 = vld [vmem:[%s7 + $0xc] sm:$0xf]
  %v1260 = vld [vmem:[%s7 + $0x10] sm:$0xf]
  %v1261 = vld [vmem:[%s7 + $0x14] sm:$0xf]
  %v1262 = vld [vmem:[%s7 + $0x18] sm:$0xf]
  %v1263 = vld [vmem:[%s7 + $0x1c] sm:$0xf]
  %v1264 = vld [vmem:[%s7 + $0x20] sm:$0xf]
  %v1265 = vld [vmem:[%s7 + $0x24] sm:$0xf]
  %v1266 = vld [vmem:[%s7 + $0x28] sm:$0xf]
  %v1267 = vld [vmem:[%s7 + $0x2c] sm:$0xf]
  %v1268 = vld [vmem:[%s7 + $0x30] sm:$0xf]
  %v1269 = vld [vmem:[%s7 + $0x34] sm:$0xf]
  %v1270 = vld [vmem:[%s7 + $0x38] sm:$0xf]
  %v1271 = vld [vmem:[%s7 + $0x3c] sm:$0xf]
  %v1272 = vld [vmem:[%s9 + $0x4] sm:$0x1]
  %v1273 = vperm.slane %v1272, 0
  %v1290 = vunpack.c.l.b16 %v1256
  %v1291 = vunpack.c.l.b16 %v1257
  %v1292 = vunpack.c.l.b16 %v1258
  %v1293 = vunpack.c.l.b16 %v1259
  %v1294 = vunpack.c.l.b16 %v1260
  %v1295 = vunpack.c.l.b16 %v1261
  %v1296 = vunpack.c.l.b16 %v1262
  %v1297 = vunpack.c.l.b16 %v1263
  %v1298 = vunpack.c.l.b16 %v1264
  %v1299 = vunpack.c.l.b16 %v1265
  %v1300 = vunpack.c.l.b16 %v1266
  %v1301 = vunpack.c.l.b16 %v1267
  %v1302 = vunpack.c.l.b16 %v1268
  %v1303 = vunpack.c.l.b16 %v1269
  %v1304 = vunpack.c.l.b16 %v1270
  %v1305 = vunpack.c.l.b16 %v1271
  %v1306 = vpack.c.b16 %v1291, %v1290
  %v1307 = vpack.c.b16 %v1293, %v1292
  %v1308 = vpack.c.b16 %v1295, %v1294
  %v1309 = vpack.c.b16 %v1297, %v1296
  %v1310 = vpack.c.b16 %v1299, %v1298
  %v1311 = vpack.c.b16 %v1301, %v1300
  %v1312 = vpack.c.b16 %v1303, %v1302
  %v1313 = vpack.c.b16 %v1305, %v1304
  %1322 = vmatpush.bf16.msra.mxu0 %v1313
  %1323 = vmatpush.bf16.msra.mxu0 %v1312
  %1324 = vmatpush.bf16.msra.mxu0 %v1311
  %1325 = vmatpush.bf16.msra.mxu0 %v1310
  %1326 = vmatpush.bf16.msra.mxu0 %v1309
  %1327 = vmatpush.bf16.msra.mxu0 %v1308
  %1328 = vmatpush.bf16.msra.mxu0 %v1307
  %1329 = vmatpush.bf16.msra.mxu0 %v1306
  %1330 = vmatmul.bf16.gmra.mxu0 %v1240
  %v1331 = vpop.f32.mrf.mxu0
  %v1332 = vadd.f32 %v1273, %v1331
  %v1333 = vpop.f32.mrf.mxu0
  %v1334 = vadd.f32 %v1273, %v1333
  %1335 = vmatmul.bf16.gmra.mxu0 %v1241
  %v1336 = vpop.f32.mrf.mxu0
  %v1337 = vadd.f32 %v1273, %v1336
  %v1338 = vpop.f32.mrf.mxu0
  %v1339 = vadd.f32 %v1273, %v1338
  %1340 = vmatmul.bf16.gmra.mxu0 %v1242
  %v1341 = vpop.f32.mrf.mxu0
  %v1342 = vadd.f32 %v1273, %v1341
  %v1343 = vpop.f32.mrf.mxu0
  %v1344 = vadd.f32 %v1273, %v1343
  %1345 = vmatmul.bf16.gmra.mxu0 %v1243
  %v1346 = vpop.f32.mrf.mxu0
  %v1347 = vadd.f32 %v1273, %v1346
  %v1348 = vpop.f32.mrf.mxu0
  %v1349 = vadd.f32 %v1273, %v1348
  %1350 = vmatmul.bf16.gmra.mxu0 %v1244
  %v1351 = vpop.f32.mrf.mxu0
  %v1352 = vadd.f32 %v1273, %v1351
  %v1353 = vpop.f32.mrf.mxu0
  %v1354 = vadd.f32 %v1273, %v1353
  %1355 = vmatmul.bf16.gmra.mxu0 %v1245
  %v1356 = vpop.f32.mrf.mxu0
  %v1357 = vadd.f32 %v1273, %v1356
  %v1358 = vpop.f32.mrf.mxu0
  %v1359 = vadd.f32 %v1273, %v1358
  %1360 = vmatmul.bf16.gmra.mxu0 %v1246
  %v1361 = vpop.f32.mrf.mxu0
  %v1362 = vadd.f32 %v1273, %v1361
  %v1363 = vpop.f32.mrf.mxu0
  %v1364 = vadd.f32 %v1273, %v1363
  %1365 = vmatmul.bf16.gmra.mxu0 %v1247
  %v1366 = vpop.f32.mrf.mxu0
  %v1367 = vadd.f32 %v1273, %v1366
  %v1368 = vpop.f32.mrf.mxu0
  %v1369 = vadd.f32 %v1273, %v1368
  %1370 = vmatmul.bf16.gmra.mxu0 %v1248
  %v1371 = vpop.f32.mrf.mxu0
  %v1372 = vadd.f32 %v1273, %v1371
  %v1373 = vpop.f32.mrf.mxu0
  %v1374 = vadd.f32 %v1273, %v1373
  %1375 = vmatmul.bf16.gmra.mxu0 %v1249
  %v1376 = vpop.f32.mrf.mxu0
  %v1377 = vadd.f32 %v1273, %v1376
  %v1378 = vpop.f32.mrf.mxu0
  %v1379 = vadd.f32 %v1273, %v1378
  %1380 = vmatmul.bf16.gmra.mxu0 %v1250
  %v1381 = vpop.f32.mrf.mxu0
  %v1382 = vadd.f32 %v1273, %v1381
  %v1383 = vpop.f32.mrf.mxu0
  %v1384 = vadd.f32 %v1273, %v1383
  %1385 = vmatmul.bf16.gmra.mxu0 %v1251
  %v1386 = vpop.f32.mrf.mxu0
  %v1387 = vadd.f32 %v1273, %v1386
  %v1388 = vpop.f32.mrf.mxu0
  %v1389 = vadd.f32 %v1273, %v1388
  %1390 = vmatmul.bf16.gmra.mxu0 %v1252
  %v1391 = vpop.f32.mrf.mxu0
  %v1392 = vadd.f32 %v1273, %v1391
  %v1393 = vpop.f32.mrf.mxu0
  %v1394 = vadd.f32 %v1273, %v1393
  %1395 = vmatmul.bf16.gmra.mxu0 %v1253
  %v1396 = vpop.f32.mrf.mxu0
  %v1397 = vadd.f32 %v1273, %v1396
  %v1398 = vpop.f32.mrf.mxu0
  %v1399 = vadd.f32 %v1273, %v1398
  %1400 = vmatmul.bf16.gmra.mxu0 %v1254
  %v1401 = vpop.f32.mrf.mxu0
  %v1402 = vadd.f32 %v1273, %v1401
  %v1403 = vpop.f32.mrf.mxu0
  %v1404 = vadd.f32 %v1273, %v1403
  %1405 = vmatmul.bf16.gmra.mxu0 %v1255
  %v1406 = vpop.f32.mrf.mxu0
  %v1407 = vadd.f32 %v1273, %v1406
  %v1408 = vpop.f32.mrf.mxu0
  %v1409 = vadd.f32 %v1273, %v1408
  %1410 = vdwg.mxu0
  %v1411 = vmax.f32 %v1332, 0.0
  %v1412 = vmax.f32 %v1334, 0.0
  %v1413 = vmax.f32 %v1337, 0.0
  %v1414 = vmax.f32 %v1339, 0.0
  %v1415 = vmax.f32 %v1342, 0.0
  %v1416 = vmax.f32 %v1344, 0.0
  %v1417 = vmax.f32 %v1347, 0.0
  %v1418 = vmax.f32 %v1349, 0.0
  %v1419 = vmax.f32 %v1352, 0.0
  %v1420 = vmax.f32 %v1354, 0.0
  %v1421 = vmax.f32 %v1357, 0.0
  %v1422 = vmax.f32 %v1359, 0.0
  %v1423 = vmax.f32 %v1362, 0.0
  %v1424 = vmax.f32 %v1364, 0.0
  %v1425 = vmax.f32 %v1367, 0.0
  %v1426 = vmax.f32 %v1369, 0.0
  %v1427 = vmax.f32 %v1372, 0.0
  %v1428 = vmax.f32 %v1374, 0.0
  %v1429 = vmax.f32 %v1377, 0.0
  %v1430 = vmax.f32 %v1379, 0.0
  %v1431 = vmax.f32 %v1382, 0.0
  %v1432 = vmax.f32 %v1384, 0.0
  %v1433 = vmax.f32 %v1387, 0.0
  %v1434 = vmax.f32 %v1389, 0.0
  %v1435 = vmax.f32 %v1392, 0.0
  %v1436 = vmax.f32 %v1394, 0.0
  %v1437 = vmax.f32 %v1397, 0.0
  %v1438 = vmax.f32 %v1399, 0.0
  %v1439 = vmax.f32 %v1402, 0.0
  %v1440 = vmax.f32 %v1404, 0.0
  %v1441 = vmax.f32 %v1407, 0.0
  %v1442 = vmax.f32 %v1409, 0.0
  %v1443 = vpack.c.bf16 %v1412, %v1411
  %v1444 = vpack.c.bf16 %v1414, %v1413
  %v1445 = vpack.c.bf16 %v1416, %v1415
  %v1446 = vpack.c.bf16 %v1418, %v1417
  %v1447 = vpack.c.bf16 %v1420, %v1419
  %v1448 = vpack.c.bf16 %v1422, %v1421
  %v1449 = vpack.c.bf16 %v1424, %v1423
  %v1450 = vpack.c.bf16 %v1426, %v1425
  %v1451 = vpack.c.bf16 %v1428, %v1427
  %v1452 = vpack.c.bf16 %v1430, %v1429
  %v1453 = vpack.c.bf16 %v1432, %v1431
  %v1454 = vpack.c.bf16 %v1434, %v1433
  %v1455 = vpack.c.bf16 %v1436, %v1435
  %v1456 = vpack.c.bf16 %v1438, %v1437
  %v1457 = vpack.c.bf16 %v1440, %v1439
  %v1458 = vpack.c.bf16 %v1442, %v1441
  %v1459 = vld [vmem:[%s8] sm:$0xf]
  %v1460 = vld [vmem:[%s8 + $0x4] sm:$0xf]
  %v1461 = vld [vmem:[%s8 + $0x8] sm:$0xf]
  %v1462 = vld [vmem:[%s8 + $0xc] sm:$0xf]
  %v1463 = vld [vmem:[%s8 + $0x10] sm:$0xf]
  %v1464 = vld [vmem:[%s8 + $0x14] sm:$0xf]
  %v1465 = vld [vmem:[%s8 + $0x18] sm:$0xf]
  %v1466 = vld [vmem:[%s8 + $0x1c] sm:$0xf]
  %v1467 = vld [vmem:[%s8 + $0x20] sm:$0xf]
  %v1468 = vld [vmem:[%s8 + $0x24] sm:$0xf]
  %v1469 = vld [vmem:[%s8 + $0x28] sm:$0xf]
  %v1470 = vld [vmem:[%s8 + $0x2c] sm:$0xf]
  %v1471 = vld [vmem:[%s8 + $0x30] sm:$0xf]
  %v1472 = vld [vmem:[%s8 + $0x34] sm:$0xf]
  %v1473 = vld [vmem:[%s8 + $0x38] sm:$0xf]
  %v1474 = vld [vmem:[%s8 + $0x3c] sm:$0xf]
  %v1475 = vld [vmem:[%s9 + $0x5] sm:$0x1]
  %v1476 = vperm.slane %v1475, 0
  %v1493 = vunpack.c.l.b16 %v1459
  %v1494 = vunpack.c.l.b16 %v1460
  %v1495 = vunpack.c.l.b16 %v1461
  %v1496 = vunpack.c.l.b16 %v1462
  %v1497 = vunpack.c.l.b16 %v1463
  %v1498 = vunpack.c.l.b16 %v1464
  %v1499 = vunpack.c.l.b16 %v1465
  %v1500 = vunpack.c.l.b16 %v1466
  %v1501 = vunpack.c.l.b16 %v1467
  %v1502 = vunpack.c.l.b16 %v1468
  %v1503 = vunpack.c.l.b16 %v1469
  %v1504 = vunpack.c.l.b16 %v1470
  %v1505 = vunpack.c.l.b16 %v1471
  %v1506 = vunpack.c.l.b16 %v1472
  %v1507 = vunpack.c.l.b16 %v1473
  %v1508 = vunpack.c.l.b16 %v1474
  %v1509 = vpack.c.b16 %v1494, %v1493
  %v1510 = vpack.c.b16 %v1496, %v1495
  %v1511 = vpack.c.b16 %v1498, %v1497
  %v1512 = vpack.c.b16 %v1500, %v1499
  %v1513 = vpack.c.b16 %v1502, %v1501
  %v1514 = vpack.c.b16 %v1504, %v1503
  %v1515 = vpack.c.b16 %v1506, %v1505
  %v1516 = vpack.c.b16 %v1508, %v1507
  %1525 = vmatpush.bf16.msra.mxu0 %v1516
  %1526 = vmatpush.bf16.msra.mxu0 %v1515
  %1527 = vmatpush.bf16.msra.mxu0 %v1514
  %1528 = vmatpush.bf16.msra.mxu0 %v1513
  %1529 = vmatpush.bf16.msra.mxu0 %v1512
  %1530 = vmatpush.bf16.msra.mxu0 %v1511
  %1531 = vmatpush.bf16.msra.mxu0 %v1510
  %1532 = vmatpush.bf16.msra.mxu0 %v1509
  %1533 = vmatmul.bf16.gmra.mxu0 %v1443
  %v1534 = vpop.f32.mrf.mxu0
  %v1535 = vadd.f32 %v1476, %v1534
  %v1536 = vpop.f32.mrf.mxu0
  %v1537 = vadd.f32 %v1476, %v1536
  %1538 = vmatmul.bf16.gmra.mxu0 %v1444
  %v1539 = vpop.f32.mrf.mxu0
  %v1540 = vadd.f32 %v1476, %v1539
  %v1541 = vpop.f32.mrf.mxu0
  %v1542 = vadd.f32 %v1476, %v1541
  %1543 = vmatmul.bf16.gmra.mxu0 %v1445
  %v1544 = vpop.f32.mrf.mxu0
  %v1545 = vadd.f32 %v1476, %v1544
  %v1546 = vpop.f32.mrf.mxu0
  %v1547 = vadd.f32 %v1476, %v1546
  %1548 = vmatmul.bf16.gmra.mxu0 %v1446
  %v1549 = vpop.f32.mrf.mxu0
  %v1550 = vadd.f32 %v1476, %v1549
  %v1551 = vpop.f32.mrf.mxu0
  %v1552 = vadd.f32 %v1476, %v1551
  %1553 = vmatmul.bf16.gmra.mxu0 %v1447
  %v1554 = vpop.f32.mrf.mxu0
  %v1555 = vadd.f32 %v1476, %v1554
  %v1556 = vpop.f32.mrf.mxu0
  %v1557 = vadd.f32 %v1476, %v1556
  %1558 = vmatmul.bf16.gmra.mxu0 %v1448
  %v1559 = vpop.f32.mrf.mxu0
  %v1560 = vadd.f32 %v1476, %v1559
  %v1561 = vpop.f32.mrf.mxu0
  %v1562 = vadd.f32 %v1476, %v1561
  %1563 = vmatmul.bf16.gmra.mxu0 %v1449
  %v1564 = vpop.f32.mrf.mxu0
  %v1565 = vadd.f32 %v1476, %v1564
  %v1566 = vpop.f32.mrf.mxu0
  %v1567 = vadd.f32 %v1476, %v1566
  %1568 = vmatmul.bf16.gmra.mxu0 %v1450
  %v1569 = vpop.f32.mrf.mxu0
  %v1570 = vadd.f32 %v1476, %v1569
  %v1571 = vpop.f32.mrf.mxu0
  %v1572 = vadd.f32 %v1476, %v1571
  %1573 = vmatmul.bf16.gmra.mxu0 %v1451
  %v1574 = vpop.f32.mrf.mxu0
  %v1575 = vadd.f32 %v1476, %v1574
  %v1576 = vpop.f32.mrf.mxu0
  %v1577 = vadd.f32 %v1476, %v1576
  %1578 = vmatmul.bf16.gmra.mxu0 %v1452
  %v1579 = vpop.f32.mrf.mxu0
  %v1580 = vadd.f32 %v1476, %v1579
  %v1581 = vpop.f32.mrf.mxu0
  %v1582 = vadd.f32 %v1476, %v1581
  %1583 = vmatmul.bf16.gmra.mxu0 %v1453
  %v1584 = vpop.f32.mrf.mxu0
  %v1585 = vadd.f32 %v1476, %v1584
  %v1586 = vpop.f32.mrf.mxu0
  %v1587 = vadd.f32 %v1476, %v1586
  %1588 = vmatmul.bf16.gmra.mxu0 %v1454
  %v1589 = vpop.f32.mrf.mxu0
  %v1590 = vadd.f32 %v1476, %v1589
  %v1591 = vpop.f32.mrf.mxu0
  %v1592 = vadd.f32 %v1476, %v1591
  %1593 = vmatmul.bf16.gmra.mxu0 %v1455
  %v1594 = vpop.f32.mrf.mxu0
  %v1595 = vadd.f32 %v1476, %v1594
  %v1596 = vpop.f32.mrf.mxu0
  %v1597 = vadd.f32 %v1476, %v1596
  %1598 = vmatmul.bf16.gmra.mxu0 %v1456
  %v1599 = vpop.f32.mrf.mxu0
  %v1600 = vadd.f32 %v1476, %v1599
  %v1601 = vpop.f32.mrf.mxu0
  %v1602 = vadd.f32 %v1476, %v1601
  %1603 = vmatmul.bf16.gmra.mxu0 %v1457
  %v1604 = vpop.f32.mrf.mxu0
  %v1605 = vadd.f32 %v1476, %v1604
  %v1606 = vpop.f32.mrf.mxu0
  %v1607 = vadd.f32 %v1476, %v1606
  %1608 = vmatmul.bf16.gmra.mxu0 %v1458
  %v1609 = vpop.f32.mrf.mxu0
  %v1610 = vadd.f32 %v1476, %v1609
  %v1611 = vpop.f32.mrf.mxu0
  %v1612 = vadd.f32 %v1476, %v1611
  %1613 = vdwg.mxu0
  %1614 = vst [vmem:[%s10] sm:$0xff] %v1535
  %1615 = vst [vmem:[%s10 + $0x8] sm:$0xff] %v1537
  %1616 = vst [vmem:[%s10 + $0x10] sm:$0xff] %v1540
  %1617 = vst [vmem:[%s10 + $0x18] sm:$0xff] %v1542
  %1618 = vst [vmem:[%s10 + $0x20] sm:$0xff] %v1545
  %1619 = vst [vmem:[%s10 + $0x28] sm:$0xff] %v1547
  %1620 = vst [vmem:[%s10 + $0x30] sm:$0xff] %v1550
  %1621 = vst [vmem:[%s10 + $0x38] sm:$0xff] %v1552
  %1622 = vst [vmem:[%s10 + $0x40] sm:$0xff] %v1555
  %1623 = vst [vmem:[%s10 + $0x48] sm:$0xff] %v1557
  %1624 = vst [vmem:[%s10 + $0x50] sm:$0xff] %v1560
  %1625 = vst [vmem:[%s10 + $0x58] sm:$0xff] %v1562
  %1626 = vst [vmem:[%s10 + $0x60] sm:$0xff] %v1565
  %1627 = vst [vmem:[%s10 + $0x68] sm:$0xff] %v1567
  %1628 = vst [vmem:[%s10 + $0x70] sm:$0xff] %v1570
  %1629 = vst [vmem:[%s10 + $0x78] sm:$0xff] %v1572
  %1630 = vst [vmem:[%s10 + $0x80] sm:$0xff] %v1575
  %1631 = vst [vmem:[%s10 + $0x88] sm:$0xff] %v1577
  %1632 = vst [vmem:[%s10 + $0x90] sm:$0xff] %v1580
  %1633 = vst [vmem:[%s10 + $0x98] sm:$0xff] %v1582
  %1634 = vst [vmem:[%s10 + $0xa0] sm:$0xff] %v1585
  %1635 = vst [vmem:[%s10 + $0xa8] sm:$0xff] %v1587
  %1636 = vst [vmem:[%s10 + $0xb0] sm:$0xff] %v1590
  %1637 = vst [vmem:[%s10 + $0xb8] sm:$0xff] %v1592
  %1638 = vst [vmem:[%s10 + $0xc0] sm:$0xff] %v1595
  %1639 = vst [vmem:[%s10 + $0xc8] sm:$0xff] %v1597
  %1640 = vst [vmem:[%s10 + $0xd0] sm:$0xff] %v1600
  %1641 = vst [vmem:[%s10 + $0xd8] sm:$0xff] %v1602
  %1642 = vst [vmem:[%s10 + $0xe0] sm:$0xff] %v1605
  %1643 = vst [vmem:[%s10 + $0xe8] sm:$0xff] %v1607
  %1644 = vst [vmem:[%s10 + $0xf0] sm:$0xff] %v1610
  %1645 = vst [vmem:[%s10 + $0xf8] sm:$0xff] %v1612
  // Predicated region
  $region42: #{_mapper_impl.1} parent=0 // pred_check
    _
  $region43: #{_mapper_impl.1} parent=0 // pred_check_branch
    %1647 = sbr.rel (0) target = $region45
  $region44: #{_mapper_impl.1} parent=0 // pred_region
    _
  $region45: #{_mapper_impl.1} parent=0 // pred_fallthru
    _
  // Predicated region
  $region46: #{_mapper_impl.1} parent=0 // pred_check
    _
  $region47: #{_mapper_impl.1} parent=0 // pred_check_branch
    %1649 = sbr.rel (0) target = $region49
  $region48: #{_mapper_impl.1} parent=0 // pred_region
    _
  $region49: #{_mapper_impl.1} parent=0 // pred_fallthru
    _

</llo_original>
